<compile_context>
chip_gen: v7x
topology: tpu7x:2x2x1
jax: 0.10.0
libtpu: 0.0.40
codegen_flags: <defaults>
</compile_context>

<pallas_src>
import functools

import jax
import jax.numpy as jnp
import numpy as np
from jax.experimental import pallas as pl
from jax.experimental.pallas import tpu as pltpu

NEG_SLOPE = 0.01  # torch.nn.LeakyReLU default negative_slope


def _leaky(x):
    return jnp.where(x >= 0, x, NEG_SLOPE * x)


def dist_aware_conv_kernel(m_ref, d_ref,
                           w1t_ref, b1_ref, w2t_ref, b2_ref, w3t_ref, b3_ref,
                           r_ref, lam_ref,
                           o_ref, *, precision):
    # Feature-major tiles: m_ref is [in_dim, te]; every intermediate is [out_dim, te]
    # (te = multiple of 128 in the lane axis -> lane-dense VPU/EUP work, unmasked stores).
    h = jnp.dot(w1t_ref[...], m_ref[...],
                preferred_element_type=jnp.float32, precision=precision) + b1_ref[...]
    h = _leaky(h)
    h = jnp.dot(w2t_ref[...], h,
                preferred_element_type=jnp.float32, precision=precision) + b2_ref[...]
    h = _leaky(h)
    h = jnp.dot(w3t_ref[...], h,
                preferred_element_type=jnp.float32, precision=precision) + b3_ref[...]
    h = _leaky(h)

    # distance-aware gaussian gate: exp(-(d - R)^2 * lambd), [1, te] broadcast over rows.
    R = r_ref[0, 0]
    lam = lam_ref[0, 0]
    gate = jnp.exp(-jnp.square(d_ref[...] - R) * lam)   # f32, lands on EUP (free slot)

    o_ref[...] = (h * gate).astype(o_ref.dtype)


def _choose_te(E, *, te_max=4096, min_steps=4, unit=512):
    """Pick an edge-tile: as large as possible (amortize ~0.35us/step), but keep >=min_steps
    grid steps so v7x's two TensorCores both get work.  Always a multiple of 128 (lane axis)."""
    target = -(-E // min_steps)            # cdiv(E, min_steps)
    te = -(-target // unit) * unit         # round up to a multiple of `unit`
    return max(unit, min(te, te_max))


def dist_aware_conv(atom_feats, src, dst, dis_features, params, *,
                    te=None, te_max=4096, out_dtype=jnp.float32,
                    precision=None, feature_major_out=False):
    """atom_feats: [N, in_dim]; src/dst: [E] int32; dis_features: [E, 1] (or [E]).

    Returns [E, out_dim] by default, or the feature-major slab [out_dim, E] when
    feature_major_out=True (lets a layout-aware consumer skip the final transpose)."""
    N, in_dim = atom_feats.shape
    E = src.shape[0]
    out_dim = params["w1"].shape[1]

    if te is None:
        te = _choose_te(E, te_max=te_max)
    E_pad = ((E + te - 1) // te) * te

    # Pad only the cheap per-edge vectors (indices + distance, 8 B/edge); padded edges use
    # node 0 twice and a distance of 0 -> finite garbage that is sliced off afterwards.
    dis = dis_features.reshape(E)
    if E_pad != E:
        pad = E_pad - E
        src = jnp.pad(src, (0, pad))
        dst = jnp.pad(dst, (0, pad))
        dis = jnp.pad(dis, (0, pad))

    # u_add_v gather, written straight into the feature-major (lane-dense) slab.
    # TODO(synk): fuse this gather into the kernel (in-kernel jnp.take on a VMEM-resident
    #             atom table) to drop this extra E*in_dim HBM round trip at large E.
    atom_t = atom_feats.T                       # [in_dim, N] — tiny
    m_t = atom_t[:, src] + atom_t[:, dst]       # [in_dim, E_pad]
    dis_t = dis.reshape(1, E_pad)               # [1, E_pad]

    w1t, w2t, w3t = params["w1"].T, params["w2"].T, params["w3"].T   # [out, in]/[out, out]
    b1t, b2t, b3t = params["b1"].T, params["b2"].T, params["b3"].T   # [out, 1]

    grid = (E_pad // te,)
    resident = lambda shape: pl.BlockSpec(shape, lambda i: (0, 0))   # invariant -> VMEM-resident

    out_t = pl.pallas_call(
        functools.partial(dist_aware_conv_kernel, precision=precision),
        out_shape=jax.ShapeDtypeStruct((out_dim, E_pad), out_dtype),
        grid_spec=pltpu.PrefetchScalarGridSpec(
            num_scalar_prefetch=0,
            grid=grid,
            in_specs=[
                pl.BlockSpec((in_dim, te), lambda i: (0, i)),        # m  (feature-major tile)
                pl.BlockSpec((1, te), lambda i: (0, i)),             # dis
                resident((out_dim, in_dim)),                         # W1^T
                resident((out_dim, 1)),                              # b1
                resident((out_dim, out_dim)),                        # W2^T
                resident((out_dim, 1)),                              # b2
                resident((out_dim, out_dim)),                        # W3^T
                resident((out_dim, 1)),                              # b3
                pl.BlockSpec(memory_space=pltpu.MemorySpace.SMEM),   # R      (1,1)
                pl.BlockSpec(memory_space=pltpu.MemorySpace.SMEM),   # lambd  (1,1)
            ],
            # Lane-dense output block: te-wide unmasked stores (the review's biggest lever).
            out_specs=pl.BlockSpec((out_dim, te), lambda i: (0, i)),
        ),
        compiler_params=pltpu.CompilerParams(
            dimension_semantics=("parallel",)),   # megacore-shardable on v7x
    )(m_t, dis_t, w1t, b1t, w2t, b2t, w3t, b3t, params["R"], params["lambd"])

    out_t = out_t[:, :E]
    if feature_major_out:
        return out_t            # [out_dim, E]
    return out_t.T              # [E, out_dim] (drop-in layout for the original module)


def ref_forward(atom_feats, src, dst, dis_features, params, precision=None):
    m = atom_feats[src] + atom_feats[dst]
    h = jnp.dot(m, params["w1"], precision=precision) + params["b1"]
    h = _leaky(h)
    h = jnp.dot(h, params["w2"], precision=precision) + params["b2"]
    h = _leaky(h)
    h = jnp.dot(h, params["w3"], precision=precision) + params["b3"]
    h = _leaky(h)
    gate = jnp.exp(-jnp.square(dis_features - params["R"][0, 0]) * params["lambd"][0, 0])
    return h * gate


def init_params(key, in_dim, out_dim):
    ks = jax.random.split(key, 6)

    def lin_init(kw, kb, fan_in, fan_out):
        bound = 1.0 / np.sqrt(fan_in)  # matches torch Linear uniform bound scale
        w = jax.random.uniform(kw, (fan_in, fan_out), jnp.float32, -bound, bound)
        b = jax.random.uniform(kb, (1, fan_out), jnp.float32, -bound, bound)
        return w, b

    w1, b1 = lin_init(ks[0], ks[1], in_dim, out_dim)
    w2, b2 = lin_init(ks[2], ks[3], out_dim, out_dim)
    w3, b3 = lin_init(ks[4], ks[5], out_dim, out_dim)
    return {
        "w1": w1, "b1": b1, "w2": w2, "b2": b2, "w3": w3, "b3": b3,
        "R": jnp.full((1, 1), 12.0, jnp.float32),      # nn.Parameter([12.0])
        "lambd": jnp.full((1, 1), 1.0, jnp.float32),   # nn.Parameter([1.0])
    }


if __name__ == "__main__":
    key = jax.random.PRNGKey(0)
    k_feat, k_src, k_dst, k_dis, k_par = jax.random.split(key, 5)

    # Small but realistic: E is NOT a tile multiple (exercises index/dis padding) and the
    # auto-chosen te=512 gives a 2-step grid so both v7x TensorCores get work.
    N, E = 64, 1000          # nodes, edges
    in_dim, out_dim = 16, 32

    atom_feats = jax.random.normal(k_feat, (N, in_dim), jnp.float32)
    src = jax.random.randint(k_src, (E,), 0, N)
    dst = jax.random.randint(k_dst, (E,), 0, N)
    # distances near R=12 so the gaussian gate is non-trivial
    dis_features = 12.0 + jax.random.uniform(k_dis, (E, 1), jnp.float32, -1.0, 1.0)

    params = init_params(k_par, in_dim, out_dim)

    out = dist_aware_conv(atom_feats, src, dst, dis_features, params)
    out = jax.block_until_ready(out)

    assert out.shape == (E, out_dim)

    # Reference uses the same (default) matmul precision; the slightly relaxed tolerance
    # covers accumulation-order differences between the W^T@m_t (kernel) and m@W (ref)
    # formulations.  For parity vs torch f32, pass precision=HIGHEST to both.
    ref = ref_forward(atom_feats, src, dst, dis_features, params)
    np.testing.assert_allclose(np.asarray(out), np.asarray(ref), rtol=1e-3, atol=1e-4)

    print("KERNEL_OK")
</pallas_src>

<mosaic_0001>
module attributes {stable_mosaic.version = 11 : i64} {
  func.func @dist_aware_conv_kernel(%arg0: i32, %arg1: memref<16x512xf32, #tpu.memory_space<vmem>>, %arg2: memref<1x512xf32, #tpu.memory_space<vmem>>, %arg3: memref<32x16xf32, #tpu.memory_space<vmem>>, %arg4: memref<32x1xf32, #tpu.memory_space<vmem>>, %arg5: memref<32x32xf32, #tpu.memory_space<vmem>>, %arg6: memref<32x1xf32, #tpu.memory_space<vmem>>, %arg7: memref<32x32xf32, #tpu.memory_space<vmem>>, %arg8: memref<32x1xf32, #tpu.memory_space<vmem>>, %arg9: memref<1x1xf32, #tpu.memory_space<smem>>, %arg10: memref<1x1xf32, #tpu.memory_space<smem>>, %arg11: memref<32x512xf32, #tpu.memory_space<vmem>>) attributes {dimension_semantics = [#tpu.dimension_semantics<parallel>], iteration_bounds = array<i64: 2>, scalar_prefetch = 0 : i64, scratch_operands = 0 : i64, tpu.core_type = #tpu.core_type<tc>, window_params = [{transform_indices = @transform_0, window_bounds = array<i64: 16, 512>}, {transform_indices = @transform_1, window_bounds = array<i64: 1, 512>}, {pipeline_mode = #tpu.pipeline_mode<synchronous>, transform_indices = @transform_2, window_bounds = array<i64: 32, 16>}, {pipeline_mode = #tpu.pipeline_mode<synchronous>, transform_indices = @transform_3, window_bounds = array<i64: 32, 1>}, {pipeline_mode = #tpu.pipeline_mode<synchronous>, transform_indices = @transform_4, window_bounds = array<i64: 32, 32>}, {pipeline_mode = #tpu.pipeline_mode<synchronous>, transform_indices = @transform_5, window_bounds = array<i64: 32, 1>}, {pipeline_mode = #tpu.pipeline_mode<synchronous>, transform_indices = @transform_6, window_bounds = array<i64: 32, 32>}, {pipeline_mode = #tpu.pipeline_mode<synchronous>, transform_indices = @transform_7, window_bounds = array<i64: 32, 1>}, {transform_indices = @transform_8, window_bounds = array<i64: 1, 1>}, {transform_indices = @transform_9, window_bounds = array<i64: 1, 1>}, {transform_indices = @transform_10, window_bounds = array<i64: 32, 512>}]} {
    %c0 = arith.constant 0 : index
    %c0_0 = arith.constant 0 : index
    %0 = vector.load %arg3[%c0, %c0_0] : memref<32x16xf32, #tpu.memory_space<vmem>>, vector<32x16xf32>
    %c0_1 = arith.constant 0 : index
    %c0_2 = arith.constant 0 : index
    %1 = vector.load %arg1[%c0_1, %c0_2] : memref<16x512xf32, #tpu.memory_space<vmem>>, vector<16x512xf32>
    %cst = arith.constant dense<0.000000e+00> : vector<32x512xf32>
    %2 = tpu.matmul %0, %1, %cst {dimension_numbers = #tpu.dot_dimension_numbers<[1], [0], [0], [1], [0, 0, 1, 1], [], []>} : vector<32x16xf32>, vector<16x512xf32>, vector<32x512xf32> -> vector<32x512xf32>
    %c0_3 = arith.constant 0 : index
    %c0_4 = arith.constant 0 : index
    %3 = vector.load %arg4[%c0_3, %c0_4] : memref<32x1xf32, #tpu.memory_space<vmem>>, vector<32x1xf32>
    %4 = vector.broadcast %3 : vector<32x1xf32> to vector<32x512xf32>
    %5 = arith.addf %2, %4 : vector<32x512xf32>
    %cst_5 = arith.constant 0.000000e+00 : f32
    %6 = vector.broadcast %cst_5 : f32 to vector<32x512xf32>
    %7 = arith.cmpf oge, %5, %6 : vector<32x512xf32>
    %cst_6 = arith.constant 0.00999999977 : f32
    %8 = vector.broadcast %cst_6 : f32 to vector<32x512xf32>
    %9 = arith.mulf %8, %5 : vector<32x512xf32>
    %10 = arith.select %7, %5, %9 : vector<32x512xi1>, vector<32x512xf32>
    %c0_7 = arith.constant 0 : index
    %c0_8 = arith.constant 0 : index
    %11 = vector.load %arg5[%c0_7, %c0_8] : memref<32x32xf32, #tpu.memory_space<vmem>>, vector<32x32xf32>
    %cst_9 = arith.constant dense<0.000000e+00> : vector<32x512xf32>
    %12 = tpu.matmul %11, %10, %cst_9 {dimension_numbers = #tpu.dot_dimension_numbers<[1], [0], [0], [1], [0, 0, 1, 1], [], []>} : vector<32x32xf32>, vector<32x512xf32>, vector<32x512xf32> -> vector<32x512xf32>
    %c0_10 = arith.constant 0 : index
    %c0_11 = arith.constant 0 : index
    %13 = vector.load %arg6[%c0_10, %c0_11] : memref<32x1xf32, #tpu.memory_space<vmem>>, vector<32x1xf32>
    %14 = vector.broadcast %13 : vector<32x1xf32> to vector<32x512xf32>
    %15 = arith.addf %12, %14 : vector<32x512xf32>
    %cst_12 = arith.constant 0.000000e+00 : f32
    %16 = vector.broadcast %cst_12 : f32 to vector<32x512xf32>
    %17 = arith.cmpf oge, %15, %16 : vector<32x512xf32>
    %cst_13 = arith.constant 0.00999999977 : f32
    %18 = vector.broadcast %cst_13 : f32 to vector<32x512xf32>
    %19 = arith.mulf %18, %15 : vector<32x512xf32>
    %20 = arith.select %17, %15, %19 : vector<32x512xi1>, vector<32x512xf32>
    %c0_14 = arith.constant 0 : index
    %c0_15 = arith.constant 0 : index
    %21 = vector.load %arg7[%c0_14, %c0_15] : memref<32x32xf32, #tpu.memory_space<vmem>>, vector<32x32xf32>
    %cst_16 = arith.constant dense<0.000000e+00> : vector<32x512xf32>
    %22 = tpu.matmul %21, %20, %cst_16 {dimension_numbers = #tpu.dot_dimension_numbers<[1], [0], [0], [1], [0, 0, 1, 1], [], []>} : vector<32x32xf32>, vector<32x512xf32>, vector<32x512xf32> -> vector<32x512xf32>
    %c0_17 = arith.constant 0 : index
    %c0_18 = arith.constant 0 : index
    %23 = vector.load %arg8[%c0_17, %c0_18] : memref<32x1xf32, #tpu.memory_space<vmem>>, vector<32x1xf32>
    %24 = vector.broadcast %23 : vector<32x1xf32> to vector<32x512xf32>
    %25 = arith.addf %22, %24 : vector<32x512xf32>
    %cst_19 = arith.constant 0.000000e+00 : f32
    %26 = vector.broadcast %cst_19 : f32 to vector<32x512xf32>
    %27 = arith.cmpf oge, %25, %26 : vector<32x512xf32>
    %cst_20 = arith.constant 0.00999999977 : f32
    %28 = vector.broadcast %cst_20 : f32 to vector<32x512xf32>
    %29 = arith.mulf %28, %25 : vector<32x512xf32>
    %30 = arith.select %27, %25, %29 : vector<32x512xi1>, vector<32x512xf32>
    %c0_21 = arith.constant 0 : index
    %c0_22 = arith.constant 0 : index
    %31 = memref.load %arg9[%c0_21, %c0_22] : memref<1x1xf32, #tpu.memory_space<smem>>
    %c0_23 = arith.constant 0 : index
    %c0_24 = arith.constant 0 : index
    %32 = memref.load %arg10[%c0_23, %c0_24] : memref<1x1xf32, #tpu.memory_space<smem>>
    %c0_25 = arith.constant 0 : index
    %c0_26 = arith.constant 0 : index
    %33 = vector.load %arg2[%c0_25, %c0_26] : memref<1x512xf32, #tpu.memory_space<vmem>>, vector<1x512xf32>
    %34 = vector.broadcast %31 : f32 to vector<1x512xf32>
    %35 = arith.subf %33, %34 : vector<1x512xf32>
    %36 = arith.mulf %35, %35 : vector<1x512xf32>
    %cst_27 = arith.constant 0.000000e+00 : f32
    %37 = vector.broadcast %cst_27 : f32 to vector<1x512xf32>
    %38 = arith.subf %37, %36 : vector<1x512xf32>
    %39 = vector.broadcast %32 : f32 to vector<1x512xf32>
    %40 = arith.mulf %38, %39 : vector<1x512xf32>
    %41 = math.exp %40 : vector<1x512xf32>
    %42 = vector.broadcast %41 : vector<1x512xf32> to vector<32x512xf32>
    %43 = arith.mulf %30, %42 : vector<32x512xf32>
    %c0_28 = arith.constant 0 : index
    %c0_29 = arith.constant 0 : index
    %44 = vector.load %arg11[%c0_28, %c0_29] : memref<32x512xf32, #tpu.memory_space<vmem>>, vector<32x512xf32>
    tpu.vector_store %arg11[%c0_28, %c0_29], %43 {strides = array<i32>} : memref<32x512xf32, #tpu.memory_space<vmem>>, vector<32x512xf32>,
    return
  }
  func.func @transform_0(%arg0: i32) -> (i32, i32) {
    %c0_i32 = arith.constant 0 : i32
    %c0_i32_0 = arith.constant 0 : i32
    return %c0_i32, %arg0 : i32, i32
  }
  func.func @transform_1(%arg0: i32) -> (i32, i32) {
    %c0_i32 = arith.constant 0 : i32
    %c0_i32_0 = arith.constant 0 : i32
    return %c0_i32, %arg0 : i32, i32
  }
  func.func @transform_2(%arg0: i32) -> (i32, i32) {
    %c0_i32 = arith.constant 0 : i32
    %c0_i32_0 = arith.constant 0 : i32
    %c0_i32_1 = arith.constant 0 : i32
    return %c0_i32, %c0_i32_0 : i32, i32
  }
  func.func @transform_3(%arg0: i32) -> (i32, i32) {
    %c0_i32 = arith.constant 0 : i32
    %c0_i32_0 = arith.constant 0 : i32
    %c0_i32_1 = arith.constant 0 : i32
    return %c0_i32, %c0_i32_0 : i32, i32
  }
  func.func @transform_4(%arg0: i32) -> (i32, i32) {
    %c0_i32 = arith.constant 0 : i32
    %c0_i32_0 = arith.constant 0 : i32
    %c0_i32_1 = arith.constant 0 : i32
    return %c0_i32, %c0_i32_0 : i32, i32
  }
  func.func @transform_5(%arg0: i32) -> (i32, i32) {
    %c0_i32 = arith.constant 0 : i32
    %c0_i32_0 = arith.constant 0 : i32
    %c0_i32_1 = arith.constant 0 : i32
    return %c0_i32, %c0_i32_0 : i32, i32
  }
  func.func @transform_6(%arg0: i32) -> (i32, i32) {
    %c0_i32 = arith.constant 0 : i32
    %c0_i32_0 = arith.constant 0 : i32
    %c0_i32_1 = arith.constant 0 : i32
    return %c0_i32, %c0_i32_0 : i32, i32
  }
  func.func @transform_7(%arg0: i32) -> (i32, i32) {
    %c0_i32 = arith.constant 0 : i32
    %c0_i32_0 = arith.constant 0 : i32
    %c0_i32_1 = arith.constant 0 : i32
    return %c0_i32, %c0_i32_0 : i32, i32
  }
  func.func @transform_8(%arg0: i32) -> (i32, i32) {
    %c0_i32 = arith.constant 0 : i32
    %c0_i32_0 = arith.constant 0 : i32
    %c0_i32_1 = arith.constant 0 : i32
    return %c0_i32, %c0_i32_0 : i32, i32
  }
  func.func @transform_9(%arg0: i32) -> (i32, i32) {
    %c0_i32 = arith.constant 0 : i32
    %c0_i32_0 = arith.constant 0 : i32
    %c0_i32_1 = arith.constant 0 : i32
    return %c0_i32, %c0_i32_0 : i32, i32
  }
  func.func @transform_10(%arg0: i32) -> (i32, i32) {
    %c0_i32 = arith.constant 0 : i32
    %c0_i32_0 = arith.constant 0 : i32
    return %c0_i32, %arg0 : i32, i32
  }
}

</mosaic_0001>

<llo_original>
// kernel: tpu_custom_call.1
$region0: #{tpu_custom_call.1}
  #allocation0 [shape = 'u32[]', space=smem, size = 0x4, offset = 0x4, fixed_abs, tag = 'smem constant byte address 0x4 - core index']
  #allocation1 [shape = 'u32[144,128]{1,0:T(1,128)}', space=vmem, size = 0x12000, scoped, tag = 'internal scratch']
  #allocation2 [shape = 'f32[1,1]{1,0:T(1,128)S(6)}', space=smem, size = 0x200, scoped, tag = 'scoped memory for tpu_custom_call.1']
  #allocation3 [shape = 'f32[1,1]{1,0:T(1,128)S(6)}', space=smem, size = 0x200, scoped, tag = 'scoped memory for tpu_custom_call.1']
  %s0 = inlined_call_operand.vmem [shape: f32[16,1024], index: 0, kind: input, shape index: {}]
  %s1 = inlined_call_operand.hbm [shape: f32[1,1024], index: 1, kind: input, shape index: {}]
  %s2 = inlined_call_operand.vmem [shape: f32[32,16], index: 2, kind: input, shape index: {}]
  %s3 = inlined_call_operand.vmem [shape: f32[32,1], index: 3, kind: input, shape index: {}]
  %s4 = inlined_call_operand.vmem [shape: f32[32,32], index: 4, kind: input, shape index: {}]
  %s5 = inlined_call_operand.vmem [shape: f32[32,1], index: 5, kind: input, shape index: {}]
  %s6 = inlined_call_operand.hbm [shape: f32[32,32], index: 6, kind: input, shape index: {}]
  %s7 = inlined_call_operand.vmem [shape: f32[32,1], index: 7, kind: input, shape index: {}]
  %s8 = inlined_call_operand.<no memory space> [shape: f32[1,1], index: 8, kind: input, shape index: {}]
  %s9 = inlined_call_operand.<no memory space> [shape: f32[1,1], index: 9, kind: input, shape index: {}]
  %s10 = inlined_call_operand.hbm [shape: f32[32,1024], index: 10, kind: output, shape index: {}]
  %s11 = sld [smem:[#allocation0]]
  $region104: #{tpu_custom_call.1} parent=0
    _
  %s13 = ssub.s32 1, %s11
  %s14 = scalar_select 0, %s13, %s11
  %15 = sst [smem:[#allocation2]] %s8
  %16 = sst [smem:[#allocation3]] %s9
  $region1: #{tpu_custom_call.1} parent=0
    #allocation4 [shape = 'u8[65536]{0}', space=vmem, size = 0x10000, scoped, tag = 'input window, operand 0']
    #allocation5 [shape = 'u8[4096]{0}', space=vmem, size = 0x1000, scoped, tag = 'input window, operand 1']
    #allocation6 [shape = 's32[2]{0}', space=sflag, size = 0x8, scoped, tag = 'scoped memory for tpu_custom_call.1']
    #allocation7 [shape = 's32[2]{0}', space=sflag, size = 0x8, scoped, tag = 'scoped memory for tpu_custom_call.1']
    #allocation8 [shape = 'u8[16384]{0}', space=vmem, size = 0x4000, scoped, tag = 'input window, operand 6, single buffered']
    #allocation9 [shape = 's32[1]{0}', space=sflag, size = 0x4, scoped, tag = 'scoped memory for tpu_custom_call.1']
    #allocation10 [shape = 'u8[131072]{0}', space=vmem, size = 0x20000, scoped, tag = 'output window, operand 0']
    %17 = vsyncpa [#allocation6], 0
    %s18 = scalar_lea.sflag [#allocation6], 1
    %19 = vsyncpa %s18, 0
    %20 = vsyncpa [#allocation9], 0
    %21 = vsyncpa [#allocation7], 0
    %s22 = scalar_lea.sflag [#allocation7], 1
    %23 = vsyncpa %s22, 0
    loop: start=0, step=1, limit=4
    $region2: #{tpu_custom_call.1} parent=1 // loop_pre_header
      _
    $region3: #{tpu_custom_call.1} parent=1 // loop_header
      %s25 = sphi 0, %s29
      %p26 = scmp.ge.s32.totalorder %s25, 4
      %s35 = sphi 0, %s37
      %s38 = sphi 0, %s35
      %s39 = sphi 0, %s38
      %s55 = sphi 0, %s39
      %s61 = sphi 0, %s63
      %s64 = sphi 0, %s61
      %s65 = sphi 0, %s64
      %s81 = sphi 0, %s65
      %s85 = sphi 0, %s85
      %s87 = sphi 0, %s85
      %s88 = sphi 0, %s87
      %s102 = sphi 0, %s88
      %s106 = sphi 0, %s106
      %s108 = sphi 0, %s106
      %s109 = sphi 0, %s108
      %s123 = sphi 0, %s109
      %s127 = sphi 0, %s127
      %s129 = sphi 0, %s127
      %s130 = sphi 0, %s129
      %s144 = sphi 0, %s130
      %s148 = sphi 0, %s148
      %s150 = sphi 0, %s148
      %s151 = sphi 0, %s150
      %s165 = sphi 0, %s151
      %s169 = sphi 0, %s169
      %s171 = sphi 0, %s169
      %s172 = sphi 0, %s171
      %s186 = sphi 0, %s172
      %s190 = sphi 0, %s190
      %s192 = sphi 0, %s190
      %s193 = sphi 0, %s192
      %s207 = sphi 0, %s193
      %s211 = sphi 0, %s211
      %s213 = sphi 0, %s211
      %s214 = sphi 0, %s213
      %s228 = sphi 0, %s214
      %s232 = sphi 0, %s232
      %s234 = sphi 0, %s232
      %s235 = sphi 0, %s234
      %s249 = sphi 0, %s235
      %s255 = sphi 0, %s257
      %s258 = sphi 0, %s255
      %s259 = sphi 0, %s258
      %s275 = sphi 0, %s259
    $region4: #{tpu_custom_call.1} parent=1 // loop_header_branch
      %28 = sbr.rel (%p26) target = $region8
    $region5: #{tpu_custom_call.1} parent=1 // loop_body
      %s30 = ssub.s32 %s25, 1
      %s31 = ssub.s32 %s25, 2
      %s32 = sadd.s32 %s25, 1
      %s33 = ssub.s32 %s25, %s32
      %p34 = scmp.eq.s32.totalorder %s33, 0
      %s36 = sadd.s32 %s35, 1
      %s37 = scalar_select %p34, %s35, %s36
      %p40 = pneg %p34
      %p41 = scmp.eq.s32.totalorder %s25, 1
      %p42 = por %p40, %p41
      %p43 = scmp.ne.s32.totalorder %s35, %s38
      %p44 = scmp.eq.s32.totalorder %s25, 0
      %p45 = por %p43, %p44
      %p46 = scmp.ne.s32.totalorder %s35, %s38
      %p47 = scmp.eq.s32.totalorder %s30, 1
      %p48 = por %p46, %p47
      %p49 = scmp.ne.s32.totalorder %s38, %s39
      %p50 = scmp.eq.s32.totalorder %s30, 0
      %p51 = por %p49, %p50
      %p52 = scmp.ne.s32.totalorder %s38, %s39
      %p53 = scmp.eq.s32.totalorder %s31, 1
      %p54 = por %p52, %p53
      %p56 = scmp.ne.s32.totalorder %s39, %s55
      %p57 = scmp.eq.s32.totalorder %s31, 0
      %p58 = por %p56, %p57
      %s59 = ssub.s32 %s25, %s32
      %p60 = scmp.eq.s32.totalorder %s59, 0
      %s62 = sadd.s32 %s61, 1
      %s63 = scalar_select %p60, %s61, %s62
      %p66 = pneg %p60
      %p67 = scmp.eq.s32.totalorder %s25, 1
      %p68 = por %p66, %p67
      %p69 = scmp.ne.s32.totalorder %s61, %s64
      %p70 = scmp.eq.s32.totalorder %s25, 0
      %p71 = por %p69, %p70
      %p72 = scmp.ne.s32.totalorder %s61, %s64
      %p73 = scmp.eq.s32.totalorder %s30, 1
      %p74 = por %p72, %p73
      %p75 = scmp.ne.s32.totalorder %s64, %s65
      %p76 = scmp.eq.s32.totalorder %s30, 0
      %p77 = por %p75, %p76
      %p78 = scmp.ne.s32.totalorder %s64, %s65
      %p79 = scmp.eq.s32.totalorder %s31, 1
      %p80 = por %p78, %p79
      %p82 = scmp.ne.s32.totalorder %s65, %s81
      %p83 = scmp.eq.s32.totalorder %s31, 0
      %p84 = por %p82, %p83
      %s86 = sadd.s32 %s85, 1
      %p89 = scmp.eq.s32.totalorder %s25, 1
      %p90 = scmp.ne.s32.totalorder %s85, %s87
      %p91 = scmp.eq.s32.totalorder %s25, 0
      %p92 = por %p90, %p91
      %p93 = scmp.ne.s32.totalorder %s85, %s87
      %p94 = scmp.eq.s32.totalorder %s30, 1
      %p95 = por %p93, %p94
      %p96 = scmp.ne.s32.totalorder %s87, %s88
      %p97 = scmp.eq.s32.totalorder %s30, 0
      %p98 = por %p96, %p97
      %p99 = scmp.ne.s32.totalorder %s87, %s88
      %p100 = scmp.eq.s32.totalorder %s31, 1
      %p101 = por %p99, %p100
      %p103 = scmp.ne.s32.totalorder %s88, %s102
      %p104 = scmp.eq.s32.totalorder %s31, 0
      %p105 = por %p103, %p104
      %s107 = sadd.s32 %s106, 1
      %p110 = scmp.eq.s32.totalorder %s25, 1
      %p111 = scmp.ne.s32.totalorder %s106, %s108
      %p112 = scmp.eq.s32.totalorder %s25, 0
      %p113 = por %p111, %p112
      %p114 = scmp.ne.s32.totalorder %s106, %s108
      %p115 = scmp.eq.s32.totalorder %s30, 1
      %p116 = por %p114, %p115
      %p117 = scmp.ne.s32.totalorder %s108, %s109
      %p118 = scmp.eq.s32.totalorder %s30, 0
      %p119 = por %p117, %p118
      %p120 = scmp.ne.s32.totalorder %s108, %s109
      %p121 = scmp.eq.s32.totalorder %s31, 1
      %p122 = por %p120, %p121
      %p124 = scmp.ne.s32.totalorder %s109, %s123
      %p125 = scmp.eq.s32.totalorder %s31, 0
      %p126 = por %p124, %p125
      %s128 = sadd.s32 %s127, 1
      %p131 = scmp.eq.s32.totalorder %s25, 1
      %p132 = scmp.ne.s32.totalorder %s127, %s129
      %p133 = scmp.eq.s32.totalorder %s25, 0
      %p134 = por %p132, %p133
      %p135 = scmp.ne.s32.totalorder %s127, %s129
      %p136 = scmp.eq.s32.totalorder %s30, 1
      %p137 = por %p135, %p136
      %p138 = scmp.ne.s32.totalorder %s129, %s130
      %p139 = scmp.eq.s32.totalorder %s30, 0
      %p140 = por %p138, %p139
      %p141 = scmp.ne.s32.totalorder %s129, %s130
      %p142 = scmp.eq.s32.totalorder %s31, 1
      %p143 = por %p141, %p142
      %p145 = scmp.ne.s32.totalorder %s130, %s144
      %p146 = scmp.eq.s32.totalorder %s31, 0
      %p147 = por %p145, %p146
      %s149 = sadd.s32 %s148, 1
      %p152 = scmp.eq.s32.totalorder %s25, 1
      %p153 = scmp.ne.s32.totalorder %s148, %s150
      %p154 = scmp.eq.s32.totalorder %s25, 0
      %p155 = por %p153, %p154
      %p156 = scmp.ne.s32.totalorder %s148, %s150
      %p157 = scmp.eq.s32.totalorder %s30, 1
      %p158 = por %p156, %p157
      %p159 = scmp.ne.s32.totalorder %s150, %s151
      %p160 = scmp.eq.s32.totalorder %s30, 0
      %p161 = por %p159, %p160
      %p162 = scmp.ne.s32.totalorder %s150, %s151
      %p163 = scmp.eq.s32.totalorder %s31, 1
      %p164 = por %p162, %p163
      %p166 = scmp.ne.s32.totalorder %s151, %s165
      %p167 = scmp.eq.s32.totalorder %s31, 0
      %p168 = por %p166, %p167
      %s170 = sadd.s32 %s169, 1
      %p173 = scmp.eq.s32.totalorder %s25, 1
      %p174 = scmp.ne.s32.totalorder %s169, %s171
      %p175 = scmp.eq.s32.totalorder %s25, 0
      %p176 = por %p174, %p175
      %p177 = scmp.ne.s32.totalorder %s169, %s171
      %p178 = scmp.eq.s32.totalorder %s30, 1
      %p179 = por %p177, %p178
      %p180 = scmp.ne.s32.totalorder %s171, %s172
      %p181 = scmp.eq.s32.totalorder %s30, 0
      %p182 = por %p180, %p181
      %p183 = scmp.ne.s32.totalorder %s171, %s172
      %p184 = scmp.eq.s32.totalorder %s31, 1
      %p185 = por %p183, %p184
      %p187 = scmp.ne.s32.totalorder %s172, %s186
      %p188 = scmp.eq.s32.totalorder %s31, 0
      %p189 = por %p187, %p188
      %s191 = sadd.s32 %s190, 1
      %p194 = scmp.eq.s32.totalorder %s25, 1
      %p195 = scmp.ne.s32.totalorder %s190, %s192
      %p196 = scmp.eq.s32.totalorder %s25, 0
      %p197 = por %p195, %p196
      %p198 = scmp.ne.s32.totalorder %s190, %s192
      %p199 = scmp.eq.s32.totalorder %s30, 1
      %p200 = por %p198, %p199
      %p201 = scmp.ne.s32.totalorder %s192, %s193
      %p202 = scmp.eq.s32.totalorder %s30, 0
      %p203 = por %p201, %p202
      %p204 = scmp.ne.s32.totalorder %s192, %s193
      %p205 = scmp.eq.s32.totalorder %s31, 1
      %p206 = por %p204, %p205
      %p208 = scmp.ne.s32.totalorder %s193, %s207
      %p209 = scmp.eq.s32.totalorder %s31, 0
      %p210 = por %p208, %p209
      %s212 = sadd.s32 %s211, 1
      %p215 = scmp.eq.s32.totalorder %s25, 1
      %p216 = scmp.ne.s32.totalorder %s211, %s213
      %p217 = scmp.eq.s32.totalorder %s25, 0
      %p218 = por %p216, %p217
      %p219 = scmp.ne.s32.totalorder %s211, %s213
      %p220 = scmp.eq.s32.totalorder %s30, 1
      %p221 = por %p219, %p220
      %p222 = scmp.ne.s32.totalorder %s213, %s214
      %p223 = scmp.eq.s32.totalorder %s30, 0
      %p224 = por %p222, %p223
      %p225 = scmp.ne.s32.totalorder %s213, %s214
      %p226 = scmp.eq.s32.totalorder %s31, 1
      %p227 = por %p225, %p226
      %p229 = scmp.ne.s32.totalorder %s214, %s228
      %p230 = scmp.eq.s32.totalorder %s31, 0
      %p231 = por %p229, %p230
      %s233 = sadd.s32 %s232, 1
      %p236 = scmp.eq.s32.totalorder %s25, 1
      %p237 = scmp.ne.s32.totalorder %s232, %s234
      %p238 = scmp.eq.s32.totalorder %s25, 0
      %p239 = por %p237, %p238
      %p240 = scmp.ne.s32.totalorder %s232, %s234
      %p241 = scmp.eq.s32.totalorder %s30, 1
      %p242 = por %p240, %p241
      %p243 = scmp.ne.s32.totalorder %s234, %s235
      %p244 = scmp.eq.s32.totalorder %s30, 0
      %p245 = por %p243, %p244
      %p246 = scmp.ne.s32.totalorder %s234, %s235
      %p247 = scmp.eq.s32.totalorder %s31, 1
      %p248 = por %p246, %p247
      %p250 = scmp.ne.s32.totalorder %s235, %s249
      %p251 = scmp.eq.s32.totalorder %s31, 0
      %p252 = por %p250, %p251
      %s253 = ssub.s32 %s25, %s32
      %p254 = scmp.eq.s32.totalorder %s253, 0
      %s256 = sadd.s32 %s255, 1
      %s257 = scalar_select %p254, %s255, %s256
      %p260 = pneg %p254
      %p261 = scmp.eq.s32.totalorder %s25, 1
      %p262 = por %p260, %p261
      %p263 = scmp.ne.s32.totalorder %s255, %s258
      %p264 = scmp.eq.s32.totalorder %s25, 0
      %p265 = por %p263, %p264
      %p266 = scmp.ne.s32.totalorder %s255, %s258
      %p267 = scmp.eq.s32.totalorder %s30, 1
      %p268 = por %p266, %p267
      %p269 = scmp.ne.s32.totalorder %s258, %s259
      %p270 = scmp.eq.s32.totalorder %s30, 0
      %p271 = por %p269, %p270
      %p272 = scmp.ne.s32.totalorder %s258, %s259
      %p273 = scmp.eq.s32.totalorder %s31, 1
      %p274 = por %p272, %p273
      %p276 = scmp.ne.s32.totalorder %s259, %s275
      %p277 = scmp.eq.s32.totalorder %s31, 0
      %p278 = por %p276, %p277
      %p279 = scmp.le.s32.totalorder 1, %s25
      %p280 = scmp.lt.s32.totalorder %s25, 3
      %p281 = pnand %p279, %p280
      %p282 = pneg %p281
      // Predicated region
      $region9: #{tpu_custom_call.1} parent=5 // pred_check
        _
      $region10: #{tpu_custom_call.1} parent=5 // pred_check_branch
        %284 = sbr.rel (%p281) target = $region12
      $region11: #{tpu_custom_call.1} parent=5 // pred_region
        %s285 = ssub.s32 %s25, 1
        // Predicated region
        $region13: #{tpu_custom_call.1} parent=11 // pred_check
          %p286 = pneg %p98
        $region14: #{tpu_custom_call.1} parent=11 // pred_check_branch
          %288 = sbr.rel (%p286) target = $region16
        $region15: #{tpu_custom_call.1} parent=11 // pred_region
          _
        $region16: #{tpu_custom_call.1} parent=11 // pred_fallthru
          _
        // Predicated region
        $region17: #{tpu_custom_call.1} parent=11 // pred_check
          %p289 = pneg %p119
        $region18: #{tpu_custom_call.1} parent=11 // pred_check_branch
          %291 = sbr.rel (%p289) target = $region20
        $region19: #{tpu_custom_call.1} parent=11 // pred_region
          _
        $region20: #{tpu_custom_call.1} parent=11 // pred_fallthru
          _
        // Predicated region
        $region21: #{tpu_custom_call.1} parent=11 // pred_check
          %p292 = pneg %p140
        $region22: #{tpu_custom_call.1} parent=11 // pred_check_branch
          %294 = sbr.rel (%p292) target = $region24
        $region23: #{tpu_custom_call.1} parent=11 // pred_region
          _
        $region24: #{tpu_custom_call.1} parent=11 // pred_fallthru
          _
        // Predicated region
        $region25: #{tpu_custom_call.1} parent=11 // pred_check
          %p295 = pneg %p161
        $region26: #{tpu_custom_call.1} parent=11 // pred_check_branch
          %297 = sbr.rel (%p295) target = $region28
        $region27: #{tpu_custom_call.1} parent=11 // pred_region
          _
        $region28: #{tpu_custom_call.1} parent=11 // pred_fallthru
          _
        // Predicated region
        $region29: #{tpu_custom_call.1} parent=11 // pred_check
          %p298 = pneg %p182
        $region30: #{tpu_custom_call.1} parent=11 // pred_check_branch
          %300 = sbr.rel (%p298) target = $region32
        $region31: #{tpu_custom_call.1} parent=11 // pred_region
          %s302 = ssub.s32 512, 512
          %303 = vsyncadd [#allocation9], %s302
          %s304 = sshll.u32 [#allocation8], 4
          %s305 = int_to_ptr.vmem [resolvable:$true] %s304
          %310 = dma.hbm_to_vmem [thread:$0]  %s6, 512, %s305, [#allocation9], 128, 128, 8
        $region32: #{tpu_custom_call.1} parent=11 // pred_fallthru
          _
        // Predicated region
        $region33: #{tpu_custom_call.1} parent=11 // pred_check
          %p311 = pneg %p203
        $region34: #{tpu_custom_call.1} parent=11 // pred_check_branch
          %313 = sbr.rel (%p311) target = $region36
        $region35: #{tpu_custom_call.1} parent=11 // pred_region
          _
        $region36: #{tpu_custom_call.1} parent=11 // pred_fallthru
          _
        // Predicated region
        $region37: #{tpu_custom_call.1} parent=11 // pred_check
          %p314 = pneg %p224
        $region38: #{tpu_custom_call.1} parent=11 // pred_check_branch
          %316 = sbr.rel (%p314) target = $region40
        $region39: #{tpu_custom_call.1} parent=11 // pred_region
          _
        $region40: #{tpu_custom_call.1} parent=11 // pred_fallthru
          _
        // Predicated region
        $region41: #{tpu_custom_call.1} parent=11 // pred_check
          %p317 = pneg %p245
        $region42: #{tpu_custom_call.1} parent=11 // pred_check_branch
          %319 = sbr.rel (%p317) target = $region44
        $region43: #{tpu_custom_call.1} parent=11 // pred_region
          _
        $region44: #{tpu_custom_call.1} parent=11 // pred_fallthru
          _
      $region12: #{tpu_custom_call.1} parent=5 // pred_fallthru
        _
      %p320 = scmp.lt.s32.totalorder %s25, 2
      // Predicated region
      $region45: #{tpu_custom_call.1} parent=5 // pred_check
        %p321 = pneg %p320
      $region46: #{tpu_custom_call.1} parent=5 // pred_check_branch
        %323 = sbr.rel (%p321) target = $region48
      $region47: #{tpu_custom_call.1} parent=5 // pred_region
        // Predicated region
        $region49: #{tpu_custom_call.1} parent=47 // pred_check
          %p324 = pneg %p45
        $region50: #{tpu_custom_call.1} parent=47 // pred_check_branch
          %326 = sbr.rel (%p324) target = $region52
        $region51: #{tpu_custom_call.1} parent=47 // pred_region
          %s327 = sand.u32 %s35, 1
          %s328 = sand.u32 %s35, 1
          %s329 = smul.addr %s328, 64
          %s330 = scalar_lea.vmem [#allocation4], %s329
          %s331 = smul.u32 4, %s25
          %s332 = smul.addr %s331, 8
          %s333 = scalar_lea.vmem %s0, %s332
          // Predicated region
          $region53: #{tpu_custom_call.1} parent=51 // pred_check
            _
          $region54: #{tpu_custom_call.1} parent=51 // pred_check_branch
            %335 = sbr.rel (0) target = $region56
          $region55: #{tpu_custom_call.1} parent=51 // pred_region
            // Predicated region
            $region57: #{tpu_custom_call.1} parent=55 // pred_check
              _
            $region58: #{tpu_custom_call.1} parent=55 // pred_check_branch
              %337 = sbr.rel (0) target = $region60
            $region59: #{tpu_custom_call.1} parent=55 // pred_region
              loop: start=0, step=1, limit=1
              $region61: #{tpu_custom_call.1} parent=59 // loop_pre_header
                _
              $region62: #{tpu_custom_call.1} parent=59 // loop_header
                %s339 = sphi 0, %s343
                %p340 = scmp.ge.s32.totalorder %s339, 1
                %s344 = sphi %s333, %s333
                %s345 = sphi %s330, %s330
              $region63: #{tpu_custom_call.1} parent=59 // loop_header_branch
                %342 = sbr.rel (%p340) target = $region67
              $region64: #{tpu_custom_call.1} parent=59 // loop_body
                %v346 = vld [vmem:[%s344] sm:$0xff]
                %347 = vst [vmem:[%s345] sm:$0xff] %v346
                %v348 = vld [vmem:[%s344 + $0x8] sm:$0xff]
                %349 = vst [vmem:[%s345 + $0x8] sm:$0xff] %v348
                %v350 = vld [vmem:[%s344 + $0x10] sm:$0xff]
                %351 = vst [vmem:[%s345 + $0x10] sm:$0xff] %v350
                %v352 = vld [vmem:[%s344 + $0x18] sm:$0xff]
                %353 = vst [vmem:[%s345 + $0x18] sm:$0xff] %v352
                %v354 = vld [vmem:[%s344 + $0x40] sm:$0xff]
                %355 = vst [vmem:[%s345 + $0x20] sm:$0xff] %v354
                %v356 = vld [vmem:[%s344 + $0x48] sm:$0xff]
                %357 = vst [vmem:[%s345 + $0x28] sm:$0xff] %v356
                %v358 = vld [vmem:[%s344 + $0x50] sm:$0xff]
                %359 = vst [vmem:[%s345 + $0x30] sm:$0xff] %v358
                %v360 = vld [vmem:[%s344 + $0x58] sm:$0xff]
                %361 = vst [vmem:[%s345 + $0x38] sm:$0xff] %v360
              $region65: #{tpu_custom_call.1} parent=59 // loop_footer
                %s343 = sadd.s32 1, %s339
              $region66: #{tpu_custom_call.1} parent=59 // loop_footer_branch
                %338 = sbr.rel target = $region62
              $region67: #{tpu_custom_call.1} parent=59 // loop_exit
                _
            $region60: #{tpu_custom_call.1} parent=55 // pred_fallthru
              _
            // Predicated region
            $region68: #{tpu_custom_call.1} parent=55 // pred_check
              _
            $region69: #{tpu_custom_call.1} parent=55 // pred_check_branch
              %363 = sbr.rel target = $region71
            $region70: #{tpu_custom_call.1} parent=55 // pred_region
              _
            $region71: #{tpu_custom_call.1} parent=55 // pred_fallthru
              _
          $region56: #{tpu_custom_call.1} parent=51 // pred_fallthru
            _
          %364 = vnop
        $region52: #{tpu_custom_call.1} parent=47 // pred_fallthru
          _
        // Predicated region
        $region72: #{tpu_custom_call.1} parent=47 // pred_check
          %p365 = pneg %p71
        $region73: #{tpu_custom_call.1} parent=47 // pred_check_branch
          %367 = sbr.rel (%p365) target = $region75
        $region74: #{tpu_custom_call.1} parent=47 // pred_region
          %s368 = sand.u32 %s61, 1
          %s369 = scalar_lea.sflag [#allocation6], %s368
          %s370 = sand.u32 %s61, 1
          %s371 = smul.addr %s370, 4
          %s372 = scalar_lea.vmem [#allocation5], %s371
          %s373 = smul.u32 4, %s25
          %s375 = ssub.s32 64, 64
          %376 = vsyncadd %s369, %s375
          %s377 = smul.addr %s373, 16
          %s378 = scalar_lea.hbm %s1, %s377
          %s380 = sshll.u32 %s372, 4
          %s381 = int_to_ptr.vmem [resolvable:$true] %s380
          %383 = dma.hbm_to_vmem [thread:$0]  %s378, 64, %s381, %s369
        $region75: #{tpu_custom_call.1} parent=47 // pred_fallthru
          _
      $region48: #{tpu_custom_call.1} parent=5 // pred_fallthru
        _
      %p384 = scmp.le.s32.totalorder 1, %s25
      %p385 = scmp.lt.s32.totalorder %s25, 3
      %p386 = pnand %p384, %p385
      %p387 = pneg %p386
      // Predicated region
      $region76: #{tpu_custom_call.1} parent=5 // pred_check
        _
      $region77: #{tpu_custom_call.1} parent=5 // pred_check_branch
        %389 = sbr.rel (%p386) target = $region79
      $region78: #{tpu_custom_call.1} parent=5 // pred_region
        %s390 = ssub.s32 %s25, 1
        %s391 = sand.u32 %s38, 1
        %s392 = sand.u32 %s38, 1
        %s393 = smul.addr %s392, 64
        %s394 = scalar_lea.vmem [#allocation4], %s393
        // Predicated region
        $region80: #{tpu_custom_call.1} parent=78 // pred_check
          %p395 = pneg %p51
        $region81: #{tpu_custom_call.1} parent=78 // pred_check_branch
          %397 = sbr.rel (%p395) target = $region83
        $region82: #{tpu_custom_call.1} parent=78 // pred_region
          _
        $region83: #{tpu_custom_call.1} parent=78 // pred_fallthru
          _
        %s398 = sand.u32 %s64, 1
        %s399 = scalar_lea.sflag [#allocation6], %s398
        %s400 = sand.u32 %s64, 1
        %s401 = smul.addr %s400, 4
        %s402 = scalar_lea.vmem [#allocation5], %s401
        // Predicated region
        $region84: #{tpu_custom_call.1} parent=78 // pred_check
          %p403 = pneg %p77
        $region85: #{tpu_custom_call.1} parent=78 // pred_check_branch
          %405 = sbr.rel (%p403) target = $region87
        $region86: #{tpu_custom_call.1} parent=78 // pred_region
          %406 = dma.done %s399, 64
        $region87: #{tpu_custom_call.1} parent=78 // pred_fallthru
          _
        // Predicated region
        $region88: #{tpu_custom_call.1} parent=78 // pred_check
          %p407 = pneg %p182
        $region89: #{tpu_custom_call.1} parent=78 // pred_check_branch
          %409 = sbr.rel (%p407) target = $region91
        $region90: #{tpu_custom_call.1} parent=78 // pred_region
          %410 = dma.done [#allocation9], 512
        $region91: #{tpu_custom_call.1} parent=78 // pred_fallthru
          _
        %s411 = sand.u32 %s38, 1
        %s412 = sand.u32 %s38, 1
        %s413 = smul.addr %s412, 64
        %s414 = scalar_lea.vmem [#allocation4], %s413
        %p415 = pneg %p51
        %p416 = pneg %p48
        %s417 = sand.u32 %s64, 1
        %s418 = scalar_lea.sflag [#allocation6], %s417
        %s419 = sand.u32 %s64, 1
        %s420 = smul.addr %s419, 4
        %s421 = scalar_lea.vmem [#allocation5], %s420
        %p422 = pneg %p77
        %p423 = pneg %p74
        %p424 = pneg %p98
        %p425 = pneg %p95
        %p426 = pneg %p119
        %p427 = pneg %p116
        %p428 = pneg %p140
        %p429 = pneg %p137
        %p430 = pneg %p161
        %p431 = pneg %p158
        %p432 = pneg %p182
        %p433 = pneg %p179
        %p434 = pneg %p203
        %p435 = pneg %p200
        %p436 = pneg %p224
        %p437 = pneg %p221
        %p438 = pneg %p245
        %p439 = pneg %p242
        %p440 = pneg %p271
        %p441 = pneg %p268
        %s442 = sand.u32 %s258, 1
        %s443 = scalar_lea.sflag [#allocation7], %s442
        %s444 = sand.u32 %s258, 1
        %s445 = smul.addr %s444, 128
        %s446 = scalar_lea.vmem [#allocation10], %s445
        %s447 = smul.u32 4, %s30
        %s448 = smul.u32 4, %s30
        %s449 = smul.u32 4, %s30
        %v450 = vld [vmem:[%s2] sm:$0xff]
        %v451 = vld [vmem:[%s2 + $0x8] sm:$0xff]
        %v452 = vld [vmem:[%s2 + $0x10] sm:$0xff]
        %v453 = vld [vmem:[%s2 + $0x18] sm:$0xff]
        %v454 = vld [vmem:[%s394] sm:$0xff]
        %v455 = vld [vmem:[%s394 + $0x8] sm:$0xff]
        %v456 = vld [vmem:[%s394 + $0x10] sm:$0xff]
        %v457 = vld [vmem:[%s394 + $0x18] sm:$0xff]
        %v458 = vld [vmem:[%s394 + $0x20] sm:$0xff]
        %v459 = vld [vmem:[%s394 + $0x28] sm:$0xff]
        %v460 = vld [vmem:[%s394 + $0x30] sm:$0xff]
        %v461 = vld [vmem:[%s394 + $0x38] sm:$0xff]
        %v462 = vld [vmem:[%s3] sm:$0xff]
        %v463 = vld [vmem:[%s3 + $0x8] sm:$0xff]
        %v464 = vld [vmem:[%s3 + $0x10] sm:$0xff]
        %v465 = vld [vmem:[%s3 + $0x18] sm:$0xff]
        %467 = vset.pattern.permute.xlu0 0
        %468 = vperm.xlu0 %467, %v462
        %v469 = vpop.permute.xlu0 %468
        %472 = vset.pattern.permute.xlu0 0
        %473 = vperm.xlu0 %472, %v463
        %v474 = vpop.permute.xlu0 %473
        %477 = vset.pattern.permute.xlu0 0
        %478 = vperm.xlu0 %477, %v464
        %v479 = vpop.permute.xlu0 %478
        %482 = vset.pattern.permute.xlu0 0
        %483 = vperm.xlu0 %482, %v465
        %v484 = vpop.permute.xlu0 %483
        %vm486 = vcmask 130048
        %v488 = vsel %vm486, %v450, 0
        %v491 = vsel %vm486, %v451, 0
        %v494 = vsel %vm486, %v452, 0
        %v497 = vsel %vm486, %v453, 0
        %499 = vmatprep.subr.mxu0 %v455
        %500 = vmatpush1.msra.mxu0 %v454
        %501 = vmatprep.subr.mxu0 %v459
        %502 = vmatpush1.msra.mxu0 %v458
        %503 = vmatprep.subr.mxu0 0.0
        %504 = vmatpush1.msra.mxu0 0.0
        %505 = vmatprep.subr.mxu0 0.0
        %506 = vmatpush1.msra.mxu0 0.0
        %507 = vmatprep.subr.mxu0 0.0
        %508 = vmatpush1.msra.mxu0 0.0
        %509 = vmatprep.subr.mxu0 0.0
        %510 = vmatpush1.msra.mxu0 0.0
        %511 = vmatprep.subr.mxu0 0.0
        %512 = vmatpush1.msra.mxu0 0.0
        %513 = vmatprep.subr.mxu0 0.0
        %514 = vmatpush1.msra.mxu0 0.0
        %515 = vmatprep.subr.mxu0 0.0
        %516 = vmatpush1.msra.mxu0 0.0
        %517 = vmatprep.subr.mxu0 0.0
        %518 = vmatpush1.msra.mxu0 0.0
        %519 = vmatprep.subr.mxu0 0.0
        %520 = vmatpush1.msra.mxu0 0.0
        %521 = vmatprep.subr.mxu0 0.0
        %522 = vmatpush1.msra.mxu0 0.0
        %523 = vmatprep.subr.mxu0 0.0
        %524 = vmatpush1.msra.mxu0 0.0
        %525 = vmatprep.subr.mxu0 0.0
        %526 = vmatpush1.msra.mxu0 0.0
        %527 = vmatprep.subr.mxu0 0.0
        %528 = vmatpush1.msra.mxu0 0.0
        %529 = vmatprep.subr.mxu0 0.0
        %530 = vmatpush1.msra.mxu0 0.0
        %531 = vmatprep.subr.mxu0 0.0
        %532 = vmatpush1.msra.mxu0 0.0
        %533 = vmatprep.subr.mxu0 0.0
        %534 = vmatpush1.msra.mxu0 0.0
        %535 = vmatprep.subr.mxu0 0.0
        %536 = vmatpush1.msra.mxu0 0.0
        %537 = vmatprep.subr.mxu0 0.0
        %538 = vmatpush1.msra.mxu0 0.0
        %539 = vmatprep.subr.mxu0 0.0
        %540 = vmatpush1.msra.mxu0 0.0
        %541 = vmatprep.subr.mxu0 0.0
        %542 = vmatpush1.msra.mxu0 0.0
        %543 = vmatprep.subr.mxu0 0.0
        %544 = vmatpush1.msra.mxu0 0.0
        %545 = vmatprep.subr.mxu0 0.0
        %546 = vmatpush1.msra.mxu0 0.0
        %547 = vmatprep.subr.mxu0 0.0
        %548 = vmatpush1.msra.mxu0 0.0
        %549 = vmatprep.subr.mxu0 0.0
        %550 = vmatpush1.msra.mxu0 0.0
        %551 = vmatprep.subr.mxu0 0.0
        %552 = vmatpush1.msra.mxu0 0.0
        %553 = vmatprep.subr.mxu0 0.0
        %554 = vmatpush1.msra.mxu0 0.0
        %555 = vmatprep.subr.mxu0 0.0
        %556 = vmatpush1.msra.mxu0 0.0
        %557 = vmatprep.subr.mxu0 0.0
        %558 = vmatpush1.msra.mxu0 0.0
        %559 = vmatprep.subr.mxu0 0.0
        %560 = vmatpush1.msra.mxu0 0.0
        %561 = vmatprep.subr.mxu0 0.0
        %562 = vmatpush1.msra.mxu0 0.0
        %563 = vmatprep.mubr.f32.mxu0 0.0
        %564 = vmatmul.mubr.f32.gmra.mrb[0].mxu0 %v488
        %v565 = vpop.f32.mrb[0].mxu0
        %v566 = vadd.f32 %v469, %v565
        %v567 = vpop.f32.mrb[0].mxu0
        %v568 = vadd.f32 %v469, %v567
        %569 = vmatprep.mubr.f32.mxu0 0.0
        %570 = vmatmul.mubr.f32.gmra.mrb[0].mxu0 %v491
        %v571 = vpop.f32.mrb[0].mxu0
        %v572 = vadd.f32 %v474, %v571
        %v573 = vpop.f32.mrb[0].mxu0
        %v574 = vadd.f32 %v474, %v573
        %575 = vmatprep.mubr.f32.mxu0 0.0
        %576 = vmatmul.mubr.f32.gmra.mrb[0].mxu0 %v494
        %v577 = vpop.f32.mrb[0].mxu0
        %v578 = vadd.f32 %v479, %v577
        %v579 = vpop.f32.mrb[0].mxu0
        %v580 = vadd.f32 %v479, %v579
        %581 = vmatprep.mubr.f32.mxu0 0.0
        %582 = vmatmul.mubr.f32.gmra.mrb[0].mxu0 %v497
        %v583 = vpop.f32.mrb[0].mxu0
        %v584 = vadd.f32 %v484, %v583
        %v585 = vpop.f32.mrb[0].mxu0
        %v586 = vadd.f32 %v484, %v585
        %587 = vdwg.mxu0
        %588 = vmatprep.subr.mxu0 %v457
        %589 = vmatpush1.msra.mxu0 %v456
        %590 = vmatprep.subr.mxu0 %v461
        %591 = vmatpush1.msra.mxu0 %v460
        %592 = vmatprep.subr.mxu0 0.0
        %593 = vmatpush1.msra.mxu0 0.0
        %594 = vmatprep.subr.mxu0 0.0
        %595 = vmatpush1.msra.mxu0 0.0
        %596 = vmatprep.subr.mxu0 0.0
        %597 = vmatpush1.msra.mxu0 0.0
        %598 = vmatprep.subr.mxu0 0.0
        %599 = vmatpush1.msra.mxu0 0.0
        %600 = vmatprep.subr.mxu0 0.0
        %601 = vmatpush1.msra.mxu0 0.0
        %602 = vmatprep.subr.mxu0 0.0
        %603 = vmatpush1.msra.mxu0 0.0
        %604 = vmatprep.subr.mxu0 0.0
        %605 = vmatpush1.msra.mxu0 0.0
        %606 = vmatprep.subr.mxu0 0.0
        %607 = vmatpush1.msra.mxu0 0.0
        %608 = vmatprep.subr.mxu0 0.0
        %609 = vmatpush1.msra.mxu0 0.0
        %610 = vmatprep.subr.mxu0 0.0
        %611 = vmatpush1.msra.mxu0 0.0
        %612 = vmatprep.subr.mxu0 0.0
        %613 = vmatpush1.msra.mxu0 0.0
        %614 = vmatprep.subr.mxu0 0.0
        %615 = vmatpush1.msra.mxu0 0.0
        %616 = vmatprep.subr.mxu0 0.0
        %617 = vmatpush1.msra.mxu0 0.0
        %618 = vmatprep.subr.mxu0 0.0
        %619 = vmatpush1.msra.mxu0 0.0
        %620 = vmatprep.subr.mxu0 0.0
        %621 = vmatpush1.msra.mxu0 0.0
        %622 = vmatprep.subr.mxu0 0.0
        %623 = vmatpush1.msra.mxu0 0.0
        %624 = vmatprep.subr.mxu0 0.0
        %625 = vmatpush1.msra.mxu0 0.0
        %626 = vmatprep.subr.mxu0 0.0
        %627 = vmatpush1.msra.mxu0 0.0
        %628 = vmatprep.subr.mxu0 0.0
        %629 = vmatpush1.msra.mxu0 0.0
        %630 = vmatprep.subr.mxu0 0.0
        %631 = vmatpush1.msra.mxu0 0.0
        %632 = vmatprep.subr.mxu0 0.0
        %633 = vmatpush1.msra.mxu0 0.0
        %634 = vmatprep.subr.mxu0 0.0
        %635 = vmatpush1.msra.mxu0 0.0
        %636 = vmatprep.subr.mxu0 0.0
        %637 = vmatpush1.msra.mxu0 0.0
        %638 = vmatprep.subr.mxu0 0.0
        %639 = vmatpush1.msra.mxu0 0.0
        %640 = vmatprep.subr.mxu0 0.0
        %641 = vmatpush1.msra.mxu0 0.0
        %642 = vmatprep.subr.mxu0 0.0
        %643 = vmatpush1.msra.mxu0 0.0
        %644 = vmatprep.subr.mxu0 0.0
        %645 = vmatpush1.msra.mxu0 0.0
        %646 = vmatprep.subr.mxu0 0.0
        %647 = vmatpush1.msra.mxu0 0.0
        %648 = vmatprep.subr.mxu0 0.0
        %649 = vmatpush1.msra.mxu0 0.0
        %650 = vmatprep.subr.mxu0 0.0
        %651 = vmatpush1.msra.mxu0 0.0
        %652 = vmatprep.mubr.f32.mxu0 0.0
        %653 = vmatmul.mubr.f32.gmra.mrb[0].mxu0 %v488
        %v654 = vpop.f32.mrb[0].mxu0
        %v655 = vadd.f32 %v469, %v654
        %v656 = vpop.f32.mrb[0].mxu0
        %v657 = vadd.f32 %v469, %v656
        %658 = vmatprep.mubr.f32.mxu0 0.0
        %659 = vmatmul.mubr.f32.gmra.mrb[0].mxu0 %v491
        %v660 = vpop.f32.mrb[0].mxu0
        %v661 = vadd.f32 %v474, %v660
        %v662 = vpop.f32.mrb[0].mxu0
        %v663 = vadd.f32 %v474, %v662
        %664 = vmatprep.mubr.f32.mxu0 0.0
        %665 = vmatmul.mubr.f32.gmra.mrb[0].mxu0 %v494
        %v666 = vpop.f32.mrb[0].mxu0
        %v667 = vadd.f32 %v479, %v666
        %v668 = vpop.f32.mrb[0].mxu0
        %v669 = vadd.f32 %v479, %v668
        %670 = vmatprep.mubr.f32.mxu0 0.0
        %671 = vmatmul.mubr.f32.gmra.mrb[0].mxu0 %v497
        %v672 = vpop.f32.mrb[0].mxu0
        %v673 = vadd.f32 %v484, %v672
        %v674 = vpop.f32.mrb[0].mxu0
        %v675 = vadd.f32 %v484, %v674
        %676 = vdwg.mxu0
        %vm677 = vcmp.ge.f32.partialorder %v566, 0.0
        %vm678 = vcmp.ge.f32.partialorder %v568, 0.0
        %vm679 = vcmp.ge.f32.partialorder %v655, 0.0
        %vm680 = vcmp.ge.f32.partialorder %v657, 0.0
        %vm681 = vcmp.ge.f32.partialorder %v572, 0.0
        %vm682 = vcmp.ge.f32.partialorder %v574, 0.0
        %vm683 = vcmp.ge.f32.partialorder %v661, 0.0
        %vm684 = vcmp.ge.f32.partialorder %v663, 0.0
        %vm685 = vcmp.ge.f32.partialorder %v578, 0.0
        %vm686 = vcmp.ge.f32.partialorder %v580, 0.0
        %vm687 = vcmp.ge.f32.partialorder %v667, 0.0
        %vm688 = vcmp.ge.f32.partialorder %v669, 0.0
        %vm689 = vcmp.ge.f32.partialorder %v584, 0.0
        %vm690 = vcmp.ge.f32.partialorder %v586, 0.0
        %vm691 = vcmp.ge.f32.partialorder %v673, 0.0
        %vm692 = vcmp.ge.f32.partialorder %v675, 0.0
        %v693 = vmul.f32 %v566, 0.01
        %v694 = vmul.f32 %v568, 0.01
        %v695 = vmul.f32 %v655, 0.01
        %v696 = vmul.f32 %v657, 0.01
        %v697 = vmul.f32 %v572, 0.01
        %v698 = vmul.f32 %v574, 0.01
        %v699 = vmul.f32 %v661, 0.01
        %v700 = vmul.f32 %v663, 0.01
        %v701 = vmul.f32 %v578, 0.01
        %v702 = vmul.f32 %v580, 0.01
        %v703 = vmul.f32 %v667, 0.01
        %v704 = vmul.f32 %v669, 0.01
        %v705 = vmul.f32 %v584, 0.01
        %v706 = vmul.f32 %v586, 0.01
        %v707 = vmul.f32 %v673, 0.01
        %v708 = vmul.f32 %v675, 0.01
        %v709 = vsel %vm677, %v566, %v693
        %v710 = vsel %vm678, %v568, %v694
        %v711 = vsel %vm679, %v655, %v695
        %v712 = vsel %vm680, %v657, %v696
        %v713 = vsel %vm681, %v572, %v697
        %v714 = vsel %vm682, %v574, %v698
        %v715 = vsel %vm683, %v661, %v699
        %v716 = vsel %vm684, %v663, %v700
        %v717 = vsel %vm685, %v578, %v701
        %v718 = vsel %vm686, %v580, %v702
        %v719 = vsel %vm687, %v667, %v703
        %v720 = vsel %vm688, %v669, %v704
        %v721 = vsel %vm689, %v584, %v705
        %v722 = vsel %vm690, %v586, %v706
        %v723 = vsel %vm691, %v673, %v707
        %v724 = vsel %vm692, %v675, %v708
        %v725 = vld [vmem:[%s4] sm:$0xff]
        %v726 = vld [vmem:[%s4 + $0x8] sm:$0xff]
        %v727 = vld [vmem:[%s4 + $0x10] sm:$0xff]
        %v728 = vld [vmem:[%s4 + $0x18] sm:$0xff]
        %v729 = vld [vmem:[%s5] sm:$0xff]
        %v730 = vld [vmem:[%s5 + $0x8] sm:$0xff]
        %v731 = vld [vmem:[%s5 + $0x10] sm:$0xff]
        %v732 = vld [vmem:[%s5 + $0x18] sm:$0xff]
        %734 = vset.pattern.permute.xlu0 0
        %735 = vperm.xlu0 %734, %v729
        %v736 = vpop.permute.xlu0 %735
        %739 = vset.pattern.permute.xlu0 0
        %740 = vperm.xlu0 %739, %v730
        %v741 = vpop.permute.xlu0 %740
        %744 = vset.pattern.permute.xlu0 0
        %745 = vperm.xlu0 %744, %v731
        %v746 = vpop.permute.xlu0 %745
        %749 = vset.pattern.permute.xlu0 0
        %750 = vperm.xlu0 %749, %v732
        %v751 = vpop.permute.xlu0 %750
        %vm753 = vcmask 261120
        %v755 = vsel %vm753, %v725, 0
        %v758 = vsel %vm753, %v726, 0
        %v761 = vsel %vm753, %v727, 0
        %v764 = vsel %vm753, %v728, 0
        %766 = vmatprep.subr.mxu0 %v710
        %767 = vmatpush1.msra.mxu0 %v709
        %768 = vmatprep.subr.mxu0 %v714
        %769 = vmatpush1.msra.mxu0 %v713
        %770 = vmatprep.subr.mxu0 %v718
        %771 = vmatpush1.msra.mxu0 %v717
        %772 = vmatprep.subr.mxu0 %v722
        %773 = vmatpush1.msra.mxu0 %v721
        %774 = vmatprep.subr.mxu0 0.0
        %775 = vmatpush1.msra.mxu0 0.0
        %776 = vmatprep.subr.mxu0 0.0
        %777 = vmatpush1.msra.mxu0 0.0
        %778 = vmatprep.subr.mxu0 0.0
        %779 = vmatpush1.msra.mxu0 0.0
        %780 = vmatprep.subr.mxu0 0.0
        %781 = vmatpush1.msra.mxu0 0.0
        %782 = vmatprep.subr.mxu0 0.0
        %783 = vmatpush1.msra.mxu0 0.0
        %784 = vmatprep.subr.mxu0 0.0
        %785 = vmatpush1.msra.mxu0 0.0
        %786 = vmatprep.subr.mxu0 0.0
        %787 = vmatpush1.msra.mxu0 0.0
        %788 = vmatprep.subr.mxu0 0.0
        %789 = vmatpush1.msra.mxu0 0.0
        %790 = vmatprep.subr.mxu0 0.0
        %791 = vmatpush1.msra.mxu0 0.0
        %792 = vmatprep.subr.mxu0 0.0
        %793 = vmatpush1.msra.mxu0 0.0
        %794 = vmatprep.subr.mxu0 0.0
        %795 = vmatpush1.msra.mxu0 0.0
        %796 = vmatprep.subr.mxu0 0.0
        %797 = vmatpush1.msra.mxu0 0.0
        %798 = vmatprep.subr.mxu0 0.0
        %799 = vmatpush1.msra.mxu0 0.0
        %800 = vmatprep.subr.mxu0 0.0
        %801 = vmatpush1.msra.mxu0 0.0
        %802 = vmatprep.subr.mxu0 0.0
        %803 = vmatpush1.msra.mxu0 0.0
        %804 = vmatprep.subr.mxu0 0.0
        %805 = vmatpush1.msra.mxu0 0.0
        %806 = vmatprep.subr.mxu0 0.0
        %807 = vmatpush1.msra.mxu0 0.0
        %808 = vmatprep.subr.mxu0 0.0
        %809 = vmatpush1.msra.mxu0 0.0
        %810 = vmatprep.subr.mxu0 0.0
        %811 = vmatpush1.msra.mxu0 0.0
        %812 = vmatprep.subr.mxu0 0.0
        %813 = vmatpush1.msra.mxu0 0.0
        %814 = vmatprep.subr.mxu0 0.0
        %815 = vmatpush1.msra.mxu0 0.0
        %816 = vmatprep.subr.mxu0 0.0
        %817 = vmatpush1.msra.mxu0 0.0
        %818 = vmatprep.subr.mxu0 0.0
        %819 = vmatpush1.msra.mxu0 0.0
        %820 = vmatprep.subr.mxu0 0.0
        %821 = vmatpush1.msra.mxu0 0.0
        %822 = vmatprep.subr.mxu0 0.0
        %823 = vmatpush1.msra.mxu0 0.0
        %824 = vmatprep.subr.mxu0 0.0
        %825 = vmatpush1.msra.mxu0 0.0
        %826 = vmatprep.subr.mxu0 0.0
        %827 = vmatpush1.msra.mxu0 0.0
        %828 = vmatprep.subr.mxu0 0.0
        %829 = vmatpush1.msra.mxu0 0.0
        %830 = vmatprep.mubr.f32.mxu0 0.0
        %831 = vmatmul.mubr.f32.gmra.mrb[0].mxu0 %v755
        %v832 = vpop.f32.mrb[0].mxu0
        %v833 = vadd.f32 %v736, %v832
        %v834 = vpop.f32.mrb[0].mxu0
        %v835 = vadd.f32 %v736, %v834
        %836 = vmatprep.mubr.f32.mxu0 0.0
        %837 = vmatmul.mubr.f32.gmra.mrb[0].mxu0 %v758
        %v838 = vpop.f32.mrb[0].mxu0
        %v839 = vadd.f32 %v741, %v838
        %v840 = vpop.f32.mrb[0].mxu0
        %v841 = vadd.f32 %v741, %v840
        %842 = vmatprep.mubr.f32.mxu0 0.0
        %843 = vmatmul.mubr.f32.gmra.mrb[0].mxu0 %v761
        %v844 = vpop.f32.mrb[0].mxu0
        %v845 = vadd.f32 %v746, %v844
        %v846 = vpop.f32.mrb[0].mxu0
        %v847 = vadd.f32 %v746, %v846
        %848 = vmatprep.mubr.f32.mxu0 0.0
        %849 = vmatmul.mubr.f32.gmra.mrb[0].mxu0 %v764
        %v850 = vpop.f32.mrb[0].mxu0
        %v851 = vadd.f32 %v751, %v850
        %v852 = vpop.f32.mrb[0].mxu0
        %v853 = vadd.f32 %v751, %v852
        %854 = vdwg.mxu0
        %855 = vmatprep.subr.mxu0 %v712
        %856 = vmatpush1.msra.mxu0 %v711
        %857 = vmatprep.subr.mxu0 %v716
        %858 = vmatpush1.msra.mxu0 %v715
        %859 = vmatprep.subr.mxu0 %v720
        %860 = vmatpush1.msra.mxu0 %v719
        %861 = vmatprep.subr.mxu0 %v724
        %862 = vmatpush1.msra.mxu0 %v723
        %863 = vmatprep.subr.mxu0 0.0
        %864 = vmatpush1.msra.mxu0 0.0
        %865 = vmatprep.subr.mxu0 0.0
        %866 = vmatpush1.msra.mxu0 0.0
        %867 = vmatprep.subr.mxu0 0.0
        %868 = vmatpush1.msra.mxu0 0.0
        %869 = vmatprep.subr.mxu0 0.0
        %870 = vmatpush1.msra.mxu0 0.0
        %871 = vmatprep.subr.mxu0 0.0
        %872 = vmatpush1.msra.mxu0 0.0
        %873 = vmatprep.subr.mxu0 0.0
        %874 = vmatpush1.msra.mxu0 0.0
        %875 = vmatprep.subr.mxu0 0.0
        %876 = vmatpush1.msra.mxu0 0.0
        %877 = vmatprep.subr.mxu0 0.0
        %878 = vmatpush1.msra.mxu0 0.0
        %879 = vmatprep.subr.mxu0 0.0
        %880 = vmatpush1.msra.mxu0 0.0
        %881 = vmatprep.subr.mxu0 0.0
        %882 = vmatpush1.msra.mxu0 0.0
        %883 = vmatprep.subr.mxu0 0.0
        %884 = vmatpush1.msra.mxu0 0.0
        %885 = vmatprep.subr.mxu0 0.0
        %886 = vmatpush1.msra.mxu0 0.0
        %887 = vmatprep.subr.mxu0 0.0
        %888 = vmatpush1.msra.mxu0 0.0
        %889 = vmatprep.subr.mxu0 0.0
        %890 = vmatpush1.msra.mxu0 0.0
        %891 = vmatprep.subr.mxu0 0.0
        %892 = vmatpush1.msra.mxu0 0.0
        %893 = vmatprep.subr.mxu0 0.0
        %894 = vmatpush1.msra.mxu0 0.0
        %895 = vmatprep.subr.mxu0 0.0
        %896 = vmatpush1.msra.mxu0 0.0
        %897 = vmatprep.subr.mxu0 0.0
        %898 = vmatpush1.msra.mxu0 0.0
        %899 = vmatprep.subr.mxu0 0.0
        %900 = vmatpush1.msra.mxu0 0.0
        %901 = vmatprep.subr.mxu0 0.0
        %902 = vmatpush1.msra.mxu0 0.0
        %903 = vmatprep.subr.mxu0 0.0
        %904 = vmatpush1.msra.mxu0 0.0
        %905 = vmatprep.subr.mxu0 0.0
        %906 = vmatpush1.msra.mxu0 0.0
        %907 = vmatprep.subr.mxu0 0.0
        %908 = vmatpush1.msra.mxu0 0.0
        %909 = vmatprep.subr.mxu0 0.0
        %910 = vmatpush1.msra.mxu0 0.0
        %911 = vmatprep.subr.mxu0 0.0
        %912 = vmatpush1.msra.mxu0 0.0
        %913 = vmatprep.subr.mxu0 0.0
        %914 = vmatpush1.msra.mxu0 0.0
        %915 = vmatprep.subr.mxu0 0.0
        %916 = vmatpush1.msra.mxu0 0.0
        %917 = vmatprep.subr.mxu0 0.0
        %918 = vmatpush1.msra.mxu0 0.0
        %919 = vmatprep.mubr.f32.mxu0 0.0
        %920 = vmatmul.mubr.f32.gmra.mrb[0].mxu0 %v755
        %v921 = vpop.f32.mrb[0].mxu0
        %v922 = vadd.f32 %v736, %v921
        %v923 = vpop.f32.mrb[0].mxu0
        %v924 = vadd.f32 %v736, %v923
        %925 = vmatprep.mubr.f32.mxu0 0.0
        %926 = vmatmul.mubr.f32.gmra.mrb[0].mxu0 %v758
        %v927 = vpop.f32.mrb[0].mxu0
        %v928 = vadd.f32 %v741, %v927
        %v929 = vpop.f32.mrb[0].mxu0
        %v930 = vadd.f32 %v741, %v929
        %931 = vmatprep.mubr.f32.mxu0 0.0
        %932 = vmatmul.mubr.f32.gmra.mrb[0].mxu0 %v761
        %v933 = vpop.f32.mrb[0].mxu0
        %v934 = vadd.f32 %v746, %v933
        %v935 = vpop.f32.mrb[0].mxu0
        %v936 = vadd.f32 %v746, %v935
        %937 = vmatprep.mubr.f32.mxu0 0.0
        %938 = vmatmul.mubr.f32.gmra.mrb[0].mxu0 %v764
        %v939 = vpop.f32.mrb[0].mxu0
        %v940 = vadd.f32 %v751, %v939
        %v941 = vpop.f32.mrb[0].mxu0
        %v942 = vadd.f32 %v751, %v941
        %943 = vdwg.mxu0
        %vm944 = vcmp.ge.f32.partialorder %v833, 0.0
        %vm945 = vcmp.ge.f32.partialorder %v835, 0.0
        %vm946 = vcmp.ge.f32.partialorder %v922, 0.0
        %vm947 = vcmp.ge.f32.partialorder %v924, 0.0
        %vm948 = vcmp.ge.f32.partialorder %v839, 0.0
        %vm949 = vcmp.ge.f32.partialorder %v841, 0.0
        %vm950 = vcmp.ge.f32.partialorder %v928, 0.0
        %vm951 = vcmp.ge.f32.partialorder %v930, 0.0
        %vm952 = vcmp.ge.f32.partialorder %v845, 0.0
        %vm953 = vcmp.ge.f32.partialorder %v847, 0.0
        %vm954 = vcmp.ge.f32.partialorder %v934, 0.0
        %vm955 = vcmp.ge.f32.partialorder %v936, 0.0
        %vm956 = vcmp.ge.f32.partialorder %v851, 0.0
        %vm957 = vcmp.ge.f32.partialorder %v853, 0.0
        %vm958 = vcmp.ge.f32.partialorder %v940, 0.0
        %vm959 = vcmp.ge.f32.partialorder %v942, 0.0
        %v960 = vmul.f32 %v833, 0.01
        %v961 = vmul.f32 %v835, 0.01
        %v962 = vmul.f32 %v922, 0.01
        %v963 = vmul.f32 %v924, 0.01
        %v964 = vmul.f32 %v839, 0.01
        %v965 = vmul.f32 %v841, 0.01
        %v966 = vmul.f32 %v928, 0.01
        %v967 = vmul.f32 %v930, 0.01
        %v968 = vmul.f32 %v845, 0.01
        %v969 = vmul.f32 %v847, 0.01
        %v970 = vmul.f32 %v934, 0.01
        %v971 = vmul.f32 %v936, 0.01
        %v972 = vmul.f32 %v851, 0.01
        %v973 = vmul.f32 %v853, 0.01
        %v974 = vmul.f32 %v940, 0.01
        %v975 = vmul.f32 %v942, 0.01
        %v976 = vsel %vm944, %v833, %v960
        %v977 = vsel %vm945, %v835, %v961
        %v978 = vsel %vm946, %v922, %v962
        %v979 = vsel %vm947, %v924, %v963
        %v980 = vsel %vm948, %v839, %v964
        %v981 = vsel %vm949, %v841, %v965
        %v982 = vsel %vm950, %v928, %v966
        %v983 = vsel %vm951, %v930, %v967
        %v984 = vsel %vm952, %v845, %v968
        %v985 = vsel %vm953, %v847, %v969
        %v986 = vsel %vm954, %v934, %v970
        %v987 = vsel %vm955, %v936, %v971
        %v988 = vsel %vm956, %v851, %v972
        %v989 = vsel %vm957, %v853, %v973
        %v990 = vsel %vm958, %v940, %v974
        %v991 = vsel %vm959, %v942, %v975
        %v992 = vld [vmem:[#allocation8] sm:$0xff]
        %v993 = vld [vmem:[#allocation8 + $0x8] sm:$0xff]
        %v994 = vld [vmem:[#allocation8 + $0x10] sm:$0xff]
        %v995 = vld [vmem:[#allocation8 + $0x18] sm:$0xff]
        %v996 = vld [vmem:[%s7] sm:$0xff]
        %v997 = vld [vmem:[%s7 + $0x8] sm:$0xff]
        %v998 = vld [vmem:[%s7 + $0x10] sm:$0xff]
        %v999 = vld [vmem:[%s7 + $0x18] sm:$0xff]
        %1001 = vset.pattern.permute.xlu0 0
        %1002 = vperm.xlu0 %1001, %v996
        %v1003 = vpop.permute.xlu0 %1002
        %1006 = vset.pattern.permute.xlu0 0
        %1007 = vperm.xlu0 %1006, %v997
        %v1008 = vpop.permute.xlu0 %1007
        %1011 = vset.pattern.permute.xlu0 0
        %1012 = vperm.xlu0 %1011, %v998
        %v1013 = vpop.permute.xlu0 %1012
        %1016 = vset.pattern.permute.xlu0 0
        %1017 = vperm.xlu0 %1016, %v999
        %v1018 = vpop.permute.xlu0 %1017
        %v1021 = vsel %vm753, %v992, 0
        %v1024 = vsel %vm753, %v993, 0
        %v1027 = vsel %vm753, %v994, 0
        %v1030 = vsel %vm753, %v995, 0
        %1032 = vmatprep.subr.mxu0 %v977
        %1033 = vmatpush1.msra.mxu0 %v976
        %1034 = vmatprep.subr.mxu0 %v981
        %1035 = vmatpush1.msra.mxu0 %v980
        %1036 = vmatprep.subr.mxu0 %v985
        %1037 = vmatpush1.msra.mxu0 %v984
        %1038 = vmatprep.subr.mxu0 %v989
        %1039 = vmatpush1.msra.mxu0 %v988
        %1040 = vmatprep.subr.mxu0 0.0
        %1041 = vmatpush1.msra.mxu0 0.0
        %1042 = vmatprep.subr.mxu0 0.0
        %1043 = vmatpush1.msra.mxu0 0.0
        %1044 = vmatprep.subr.mxu0 0.0
        %1045 = vmatpush1.msra.mxu0 0.0
        %1046 = vmatprep.subr.mxu0 0.0
        %1047 = vmatpush1.msra.mxu0 0.0
        %1048 = vmatprep.subr.mxu0 0.0
        %1049 = vmatpush1.msra.mxu0 0.0
        %1050 = vmatprep.subr.mxu0 0.0
        %1051 = vmatpush1.msra.mxu0 0.0
        %1052 = vmatprep.subr.mxu0 0.0
        %1053 = vmatpush1.msra.mxu0 0.0
        %1054 = vmatprep.subr.mxu0 0.0
        %1055 = vmatpush1.msra.mxu0 0.0
        %1056 = vmatprep.subr.mxu0 0.0
        %1057 = vmatpush1.msra.mxu0 0.0
        %1058 = vmatprep.subr.mxu0 0.0
        %1059 = vmatpush1.msra.mxu0 0.0
        %1060 = vmatprep.subr.mxu0 0.0
        %1061 = vmatpush1.msra.mxu0 0.0
        %1062 = vmatprep.subr.mxu0 0.0
        %1063 = vmatpush1.msra.mxu0 0.0
        %1064 = vmatprep.subr.mxu0 0.0
        %1065 = vmatpush1.msra.mxu0 0.0
        %1066 = vmatprep.subr.mxu0 0.0
        %1067 = vmatpush1.msra.mxu0 0.0
        %1068 = vmatprep.subr.mxu0 0.0
        %1069 = vmatpush1.msra.mxu0 0.0
        %1070 = vmatprep.subr.mxu0 0.0
        %1071 = vmatpush1.msra.mxu0 0.0
        %1072 = vmatprep.subr.mxu0 0.0
        %1073 = vmatpush1.msra.mxu0 0.0
        %1074 = vmatprep.subr.mxu0 0.0
        %1075 = vmatpush1.msra.mxu0 0.0
        %1076 = vmatprep.subr.mxu0 0.0
        %1077 = vmatpush1.msra.mxu0 0.0
        %1078 = vmatprep.subr.mxu0 0.0
        %1079 = vmatpush1.msra.mxu0 0.0
        %1080 = vmatprep.subr.mxu0 0.0
        %1081 = vmatpush1.msra.mxu0 0.0
        %1082 = vmatprep.subr.mxu0 0.0
        %1083 = vmatpush1.msra.mxu0 0.0
        %1084 = vmatprep.subr.mxu0 0.0
        %1085 = vmatpush1.msra.mxu0 0.0
        %1086 = vmatprep.subr.mxu0 0.0
        %1087 = vmatpush1.msra.mxu0 0.0
        %1088 = vmatprep.subr.mxu0 0.0
        %1089 = vmatpush1.msra.mxu0 0.0
        %1090 = vmatprep.subr.mxu0 0.0
        %1091 = vmatpush1.msra.mxu0 0.0
        %1092 = vmatprep.subr.mxu0 0.0
        %1093 = vmatpush1.msra.mxu0 0.0
        %1094 = vmatprep.subr.mxu0 0.0
        %1095 = vmatpush1.msra.mxu0 0.0
        %1096 = vmatprep.mubr.f32.mxu0 0.0
        %1097 = vmatmul.mubr.f32.gmra.mrb[0].mxu0 %v1021
        %v1098 = vpop.f32.mrb[0].mxu0
        %v1099 = vadd.f32 %v1003, %v1098
        %v1100 = vpop.f32.mrb[0].mxu0
        %v1101 = vadd.f32 %v1003, %v1100
        %1102 = vmatprep.mubr.f32.mxu0 0.0
        %1103 = vmatmul.mubr.f32.gmra.mrb[0].mxu0 %v1024
        %v1104 = vpop.f32.mrb[0].mxu0
        %v1105 = vadd.f32 %v1008, %v1104
        %v1106 = vpop.f32.mrb[0].mxu0
        %v1107 = vadd.f32 %v1008, %v1106
        %1108 = vmatprep.mubr.f32.mxu0 0.0
        %1109 = vmatmul.mubr.f32.gmra.mrb[0].mxu0 %v1027
        %v1110 = vpop.f32.mrb[0].mxu0
        %v1111 = vadd.f32 %v1013, %v1110
        %v1112 = vpop.f32.mrb[0].mxu0
        %v1113 = vadd.f32 %v1013, %v1112
        %1114 = vmatprep.mubr.f32.mxu0 0.0
        %1115 = vmatmul.mubr.f32.gmra.mrb[0].mxu0 %v1030
        %v1116 = vpop.f32.mrb[0].mxu0
        %v1117 = vadd.f32 %v1018, %v1116
        %v1118 = vpop.f32.mrb[0].mxu0
        %v1119 = vadd.f32 %v1018, %v1118
        %1120 = vdwg.mxu0
        %1121 = vmatprep.subr.mxu0 %v979
        %1122 = vmatpush1.msra.mxu0 %v978
        %1123 = vmatprep.subr.mxu0 %v983
        %1124 = vmatpush1.msra.mxu0 %v982
        %1125 = vmatprep.subr.mxu0 %v987
        %1126 = vmatpush1.msra.mxu0 %v986
        %1127 = vmatprep.subr.mxu0 %v991
        %1128 = vmatpush1.msra.mxu0 %v990
        %1129 = vmatprep.subr.mxu0 0.0
        %1130 = vmatpush1.msra.mxu0 0.0
        %1131 = vmatprep.subr.mxu0 0.0
        %1132 = vmatpush1.msra.mxu0 0.0
        %1133 = vmatprep.subr.mxu0 0.0
        %1134 = vmatpush1.msra.mxu0 0.0
        %1135 = vmatprep.subr.mxu0 0.0
        %1136 = vmatpush1.msra.mxu0 0.0
        %1137 = vmatprep.subr.mxu0 0.0
        %1138 = vmatpush1.msra.mxu0 0.0
        %1139 = vmatprep.subr.mxu0 0.0
        %1140 = vmatpush1.msra.mxu0 0.0
        %1141 = vmatprep.subr.mxu0 0.0
        %1142 = vmatpush1.msra.mxu0 0.0
        %1143 = vmatprep.subr.mxu0 0.0
        %1144 = vmatpush1.msra.mxu0 0.0
        %1145 = vmatprep.subr.mxu0 0.0
        %1146 = vmatpush1.msra.mxu0 0.0
        %1147 = vmatprep.subr.mxu0 0.0
        %1148 = vmatpush1.msra.mxu0 0.0
        %1149 = vmatprep.subr.mxu0 0.0
        %1150 = vmatpush1.msra.mxu0 0.0
        %1151 = vmatprep.subr.mxu0 0.0
        %1152 = vmatpush1.msra.mxu0 0.0
        %1153 = vmatprep.subr.mxu0 0.0
        %1154 = vmatpush1.msra.mxu0 0.0
        %1155 = vmatprep.subr.mxu0 0.0
        %1156 = vmatpush1.msra.mxu0 0.0
        %1157 = vmatprep.subr.mxu0 0.0
        %1158 = vmatpush1.msra.mxu0 0.0
        %1159 = vmatprep.subr.mxu0 0.0
        %1160 = vmatpush1.msra.mxu0 0.0
        %1161 = vmatprep.subr.mxu0 0.0
        %1162 = vmatpush1.msra.mxu0 0.0
        %1163 = vmatprep.subr.mxu0 0.0
        %1164 = vmatpush1.msra.mxu0 0.0
        %1165 = vmatprep.subr.mxu0 0.0
        %1166 = vmatpush1.msra.mxu0 0.0
        %1167 = vmatprep.subr.mxu0 0.0
        %1168 = vmatpush1.msra.mxu0 0.0
        %1169 = vmatprep.subr.mxu0 0.0
        %1170 = vmatpush1.msra.mxu0 0.0
        %1171 = vmatprep.subr.mxu0 0.0
        %1172 = vmatpush1.msra.mxu0 0.0
        %1173 = vmatprep.subr.mxu0 0.0
        %1174 = vmatpush1.msra.mxu0 0.0
        %1175 = vmatprep.subr.mxu0 0.0
        %1176 = vmatpush1.msra.mxu0 0.0
        %1177 = vmatprep.subr.mxu0 0.0
        %1178 = vmatpush1.msra.mxu0 0.0
        %1179 = vmatprep.subr.mxu0 0.0
        %1180 = vmatpush1.msra.mxu0 0.0
        %1181 = vmatprep.subr.mxu0 0.0
        %1182 = vmatpush1.msra.mxu0 0.0
        %1183 = vmatprep.subr.mxu0 0.0
        %1184 = vmatpush1.msra.mxu0 0.0
        %1185 = vmatprep.mubr.f32.mxu0 0.0
        %1186 = vmatmul.mubr.f32.gmra.mrb[0].mxu0 %v1021
        %v1187 = vpop.f32.mrb[0].mxu0
        %v1188 = vadd.f32 %v1003, %v1187
        %v1189 = vpop.f32.mrb[0].mxu0
        %v1190 = vadd.f32 %v1003, %v1189
        %1191 = vmatprep.mubr.f32.mxu0 0.0
        %1192 = vmatmul.mubr.f32.gmra.mrb[0].mxu0 %v1024
        %v1193 = vpop.f32.mrb[0].mxu0
        %v1194 = vadd.f32 %v1008, %v1193
        %v1195 = vpop.f32.mrb[0].mxu0
        %v1196 = vadd.f32 %v1008, %v1195
        %1197 = vmatprep.mubr.f32.mxu0 0.0
        %1198 = vmatmul.mubr.f32.gmra.mrb[0].mxu0 %v1027
        %v1199 = vpop.f32.mrb[0].mxu0
        %v1200 = vadd.f32 %v1013, %v1199
        %v1201 = vpop.f32.mrb[0].mxu0
        %v1202 = vadd.f32 %v1013, %v1201
        %1203 = vmatprep.mubr.f32.mxu0 0.0
        %1204 = vmatmul.mubr.f32.gmra.mrb[0].mxu0 %v1030
        %v1205 = vpop.f32.mrb[0].mxu0
        %v1206 = vadd.f32 %v1018, %v1205
        %v1207 = vpop.f32.mrb[0].mxu0
        %v1208 = vadd.f32 %v1018, %v1207
        %1209 = vdwg.mxu0
        %vm1210 = vcmp.ge.f32.partialorder %v1099, 0.0
        %vm1211 = vcmp.ge.f32.partialorder %v1101, 0.0
        %vm1212 = vcmp.ge.f32.partialorder %v1188, 0.0
        %vm1213 = vcmp.ge.f32.partialorder %v1190, 0.0
        %vm1214 = vcmp.ge.f32.partialorder %v1105, 0.0
        %vm1215 = vcmp.ge.f32.partialorder %v1107, 0.0
        %vm1216 = vcmp.ge.f32.partialorder %v1194, 0.0
        %vm1217 = vcmp.ge.f32.partialorder %v1196, 0.0
        %vm1218 = vcmp.ge.f32.partialorder %v1111, 0.0
        %vm1219 = vcmp.ge.f32.partialorder %v1113, 0.0
        %vm1220 = vcmp.ge.f32.partialorder %v1200, 0.0
        %vm1221 = vcmp.ge.f32.partialorder %v1202, 0.0
        %vm1222 = vcmp.ge.f32.partialorder %v1117, 0.0
        %vm1223 = vcmp.ge.f32.partialorder %v1119, 0.0
        %vm1224 = vcmp.ge.f32.partialorder %v1206, 0.0
        %vm1225 = vcmp.ge.f32.partialorder %v1208, 0.0
        %v1226 = vmul.f32 %v1099, 0.01
        %v1227 = vmul.f32 %v1101, 0.01
        %v1228 = vmul.f32 %v1188, 0.01
        %v1229 = vmul.f32 %v1190, 0.01
        %v1230 = vmul.f32 %v1105, 0.01
        %v1231 = vmul.f32 %v1107, 0.01
        %v1232 = vmul.f32 %v1194, 0.01
        %v1233 = vmul.f32 %v1196, 0.01
        %v1234 = vmul.f32 %v1111, 0.01
        %v1235 = vmul.f32 %v1113, 0.01
        %v1236 = vmul.f32 %v1200, 0.01
        %v1237 = vmul.f32 %v1202, 0.01
        %v1238 = vmul.f32 %v1117, 0.01
        %v1239 = vmul.f32 %v1119, 0.01
        %v1240 = vmul.f32 %v1206, 0.01
        %v1241 = vmul.f32 %v1208, 0.01
        %v1242 = vsel %vm1210, %v1099, %v1226
        %v1243 = vsel %vm1211, %v1101, %v1227
        %v1244 = vsel %vm1212, %v1188, %v1228
        %v1245 = vsel %vm1213, %v1190, %v1229
        %v1246 = vsel %vm1214, %v1105, %v1230
        %v1247 = vsel %vm1215, %v1107, %v1231
        %v1248 = vsel %vm1216, %v1194, %v1232
        %v1249 = vsel %vm1217, %v1196, %v1233
        %v1250 = vsel %vm1218, %v1111, %v1234
        %v1251 = vsel %vm1219, %v1113, %v1235
        %v1252 = vsel %vm1220, %v1200, %v1236
        %v1253 = vsel %vm1221, %v1202, %v1237
        %v1254 = vsel %vm1222, %v1117, %v1238
        %v1255 = vsel %vm1223, %v1119, %v1239
        %v1256 = vsel %vm1224, %v1206, %v1240
        %v1257 = vsel %vm1225, %v1208, %v1241
        %s1258 = sld [smem:[#allocation2]]
        %s1259 = sld [smem:[#allocation3]]
        %v1260 = vld [vmem:[%s402] sm:$0xf]
        %v1261 = vstv %s1258
        %v1262 = vsub.f32 %v1260, %v1261
        %v1263 = vmul.f32 %v1262, %v1262
        %v1264 = vsub.f32 0.0, %v1263
        %v1265 = vstv %s1259
        %v1266 = vmul.f32 %v1264, %v1265
        %v1267 = vmul.f32 %v1266, 1.442695
        %v1268 = vpow.pop %v1267
        %v1270 = vlaneseq
        %v1271 = vshrl.u32 %v1270, 7
        %v1272 = vsub.s32 0, %v1271
        %v1273 = vrot.slane %v1268, %v1272
        %v1274 = vlaneseq
        %v1275 = vshrl.u32 %v1274, 7
        %v1276 = vsub.s32 1, %v1275
        %v1277 = vrot.slane %v1268, %v1276
        %v1278 = vlaneseq
        %v1279 = vshrl.u32 %v1278, 7
        %v1280 = vsub.s32 2, %v1279
        %v1281 = vrot.slane %v1268, %v1280
        %v1282 = vlaneseq
        %v1283 = vshrl.u32 %v1282, 7
        %v1284 = vsub.s32 3, %v1283
        %v1285 = vrot.slane %v1268, %v1284
        %v1290 = vmul.f32 %v1242, %v1273
        %v1291 = vmul.f32 %v1243, %v1277
        %v1292 = vmul.f32 %v1244, %v1281
        %v1293 = vmul.f32 %v1245, %v1285
        %v1294 = vmul.f32 %v1246, %v1273
        %v1295 = vmul.f32 %v1247, %v1277
        %v1296 = vmul.f32 %v1248, %v1281
        %v1297 = vmul.f32 %v1249, %v1285
        %v1298 = vmul.f32 %v1250, %v1273
        %v1299 = vmul.f32 %v1251, %v1277
        %v1300 = vmul.f32 %v1252, %v1281
        %v1301 = vmul.f32 %v1253, %v1285
        %v1302 = vmul.f32 %v1254, %v1273
        %v1303 = vmul.f32 %v1255, %v1277
        %v1304 = vmul.f32 %v1256, %v1281
        %v1305 = vmul.f32 %v1257, %v1285
        %1306 = vst [vmem:[%s446] sm:$0xff] %v1290
        %1307 = vst [vmem:[%s446 + $0x8] sm:$0xff] %v1291
        %1308 = vst [vmem:[%s446 + $0x10] sm:$0xff] %v1292
        %1309 = vst [vmem:[%s446 + $0x18] sm:$0xff] %v1293
        %1310 = vst [vmem:[%s446 + $0x20] sm:$0xff] %v1294
        %1311 = vst [vmem:[%s446 + $0x28] sm:$0xff] %v1295
        %1312 = vst [vmem:[%s446 + $0x30] sm:$0xff] %v1296
        %1313 = vst [vmem:[%s446 + $0x38] sm:$0xff] %v1297
        %1314 = vst [vmem:[%s446 + $0x40] sm:$0xff] %v1298
        %1315 = vst [vmem:[%s446 + $0x48] sm:$0xff] %v1299
        %1316 = vst [vmem:[%s446 + $0x50] sm:$0xff] %v1300
        %1317 = vst [vmem:[%s446 + $0x58] sm:$0xff] %v1301
        %1318 = vst [vmem:[%s446 + $0x60] sm:$0xff] %v1302
        %1319 = vst [vmem:[%s446 + $0x68] sm:$0xff] %v1303
        %1320 = vst [vmem:[%s446 + $0x70] sm:$0xff] %v1304
        %1321 = vst [vmem:[%s446 + $0x78] sm:$0xff] %v1305
        %s1322 = sand.u32 %s258, 1
        %s1323 = scalar_lea.sflag [#allocation7], %s1322
        %s1324 = sand.u32 %s258, 1
        %s1325 = smul.addr %s1324, 128
        %s1326 = scalar_lea.vmem [#allocation10], %s1325
        // Predicated region
        $region92: #{tpu_custom_call.1} parent=78 // pred_check
          %p1327 = pneg %p268
        $region93: #{tpu_custom_call.1} parent=78 // pred_check_branch
          %1329 = sbr.rel (%p1327) target = $region95
        $region94: #{tpu_custom_call.1} parent=78 // pred_region
          %s1330 = smul.u32 4, %s30
          %s1332 = ssub.s32 2048, 2048
          %1333 = vsyncadd %s1323, %s1332
          %s1334 = smul.addr %s1330, 128
          %s1335 = scalar_lea.hbm %s10, %s1334
          %s1336 = sshll.u32 %s1326, 4
          %s1337 = int_to_ptr.vmem [resolvable:$true] %s1336
          %1342 = dma.vmem_to_hbm [thread:$0]  %s1337, 2048, %s1335, %s1323, 512, 1024, 32
        $region95: #{tpu_custom_call.1} parent=78 // pred_fallthru
          _
      $region79: #{tpu_custom_call.1} parent=5 // pred_fallthru
        _
      %p1343 = scmp.le.s32.totalorder 2, %s25
      // Predicated region
      $region96: #{tpu_custom_call.1} parent=5 // pred_check
        %p1344 = pneg %p1343
      $region97: #{tpu_custom_call.1} parent=5 // pred_check_branch
        %1346 = sbr.rel (%p1344) target = $region99
      $region98: #{tpu_custom_call.1} parent=5 // pred_region
        %s1347 = ssub.s32 %s25, 2
        // Predicated region
        $region100: #{tpu_custom_call.1} parent=98 // pred_check
          %p1348 = pneg %p274
        $region101: #{tpu_custom_call.1} parent=98 // pred_check_branch
          %1350 = sbr.rel (%p1348) target = $region103
        $region102: #{tpu_custom_call.1} parent=98 // pred_region
          %s1351 = sand.u32 %s259, 1
          %s1352 = scalar_lea.sflag [#allocation7], %s1351
          %s1353 = sand.u32 %s259, 1
          %s1354 = smul.addr %s1353, 128
          %s1355 = scalar_lea.vmem [#allocation10], %s1354
          %1356 = dma.done %s1352, 2048
        $region103: #{tpu_custom_call.1} parent=98 // pred_fallthru
          _
      $region99: #{tpu_custom_call.1} parent=5 // pred_fallthru
        _
    $region6: #{tpu_custom_call.1} parent=1 // loop_footer
      %s29 = sadd.s32 1, %s25
    $region7: #{tpu_custom_call.1} parent=1 // loop_footer_branch
      %24 = sbr.rel target = $region3
    $region8: #{tpu_custom_call.1} parent=1 // loop_exit
      _
    %1357 = vsyncpa [#allocation6], 1
    %s1358 = scalar_lea.sflag [#allocation6], 1
    %1359 = vsyncpa %s1358, 1
    %1360 = vsyncpa [#allocation9], 1
    %1361 = vsyncpa [#allocation7], 1
    %s1362 = scalar_lea.sflag [#allocation7], 1
    %1363 = vsyncpa %s1362, 1

</llo_original>
